<compile_context>
chip_gen: v7x
topology: tpu7x:2x2x1
jax: 0.10.0
libtpu: 0.0.40
codegen_flags: <defaults>
</compile_context>

<pallas_src>
import functools

import jax
import jax.numpy as jnp
import numpy as np
from jax import lax
from jax.experimental import pallas as pl
from jax.experimental.pallas import tpu as pltpu


def _round_up(x, m):
    return ((x + m - 1) // m) * m


def _lstm_recurrent_kernel(xw_ref, whh_ref, h0_ref, c0_ref,
                           y_ref, hn_ref, cn_ref,
                           h_sc, c_sc, *, hp, tr, seq_len, needs_mask, unroll):
    """Grid point (b, t): batch tile b, timesteps [t*tr, (t+1)*tr).

    State is carried through the fori_loop carry (vregs); the VMEM scratch is only used
    to persist h/c across grid steps (1 read + 1 write per TR-block, not per timestep).
    """
    t = pl.program_id(1)

    @pl.when(t == 0)
    def _():
        h_sc[...] = h0_ref[...]
        c_sc[...] = c0_ref[...]

    whh = whh_ref[...]                       # (Hp, 4Hp), VMEM-resident across the whole grid
    h_start = h_sc[...]                      # single scratch read per TR-block
    c_start = c_sc[...]

    def step(j, carry):
        h, c = carry                         # f32 state carried in vregs
        # gates = precomputed (x_t @ W_ih^T + b)  +  h @ W_hh^T   (single per-step matmul)
        gates = xw_ref[j].astype(jnp.float32) + jnp.dot(
            h.astype(whh.dtype), whh, preferred_element_type=jnp.float32)
        # sigmoid(x) = 0.5*(tanh(0.5x)+1): one EUP transcendental per gate, f32 (v5e-safe).
        i_g = 0.5 * (jnp.tanh(0.5 * gates[:, 0 * hp:1 * hp]) + 1.0)
        f_g = 0.5 * (jnp.tanh(0.5 * gates[:, 1 * hp:2 * hp]) + 1.0)
        g_g = jnp.tanh(gates[:, 2 * hp:3 * hp])
        o_g = 0.5 * (jnp.tanh(0.5 * gates[:, 3 * hp:4 * hp]) + 1.0)
        c_new = f_g * c + i_g * g_g
        h_new = o_g * jnp.tanh(c_new)
        if needs_mask:                       # static: only when T was padded up to Tp
            valid = (t * tr + j) < seq_len
            h_new = jnp.where(valid, h_new, h)
            c_new = jnp.where(valid, c_new, c)
        y_ref[j] = h_new.astype(y_ref.dtype)
        return (h_new, c_new)

    h_fin, c_fin = lax.fori_loop(0, tr, step, (h_start, c_start), unroll=unroll)
    h_sc[...] = h_fin                        # single scratch write per TR-block
    c_sc[...] = c_fin

    @pl.when(t == pl.num_programs(1) - 1)
    def _():
        hn_ref[...] = h_fin
        cn_ref[...] = c_fin


def _scatter_gate_rows(w, h, hp):
    """(4H, ...) -> (4Hp, ...): place each gate's H rows in its own Hp-wide lane-aligned slot."""
    out = jnp.zeros((4 * hp,) + w.shape[1:], w.dtype)
    for k in range(4):
        out = out.at[k * hp:k * hp + h].set(w[k * h:(k + 1) * h])
    return out


def lstm_memory_module(x, weights, hidden=None, *, matmul_dtype=jnp.bfloat16,
                       time_block=None, batch_tiles=None):
    """Forward of LSTMMemoryModule.

    x: (B, T, I) float32.  weights: w_ih (4H,I), w_hh (4H,H), b_ih (4H,), b_hh (4H,).
    hidden: optional (h_0, c_0), each (1, B, H).
    Returns (lstm_output (B,T,H), (h_n (1,B,H), c_n (1,B,H))).
    """
    B, T, I = x.shape
    w_ih = weights["w_ih"].astype(jnp.float32)
    w_hh = weights["w_hh"].astype(jnp.float32)
    H = w_hh.shape[1]

    # ---- padding / tiling -----------------------------------------------------------
    Bp = _round_up(B, 8)
    if batch_tiles is None:
        # v7x has 2 TensorCores; batch rows are independent, so split across a leading
        # "parallel" grid axis once there are >= 2 full sublane groups. Harmless elsewhere.
        batch_tiles = 2 if Bp >= 16 else 1
    bt = _round_up(-(-Bp // batch_tiles), 8)
    Bp = batch_tiles * bt
    Hp = _round_up(H, 128)        # lane-aligned hidden; each gate gets its own Hp-wide slot
    G = 4 * Hp

    xw_dtype = matmul_dtype       # bf16 xw stream halves the dominant HBM read (f32 if requested)
    whh_isz = jnp.dtype(matmul_dtype).itemsize
    xw_isz = jnp.dtype(xw_dtype).itemsize

    # ---- VMEM budget -> TR (timesteps per grid step) + explicit vmem_limit_bytes -----
    phys_vmem_floor = 64 << 20    # v7x per-TC physical VMEM (smallest of v5e/v6e/v7x)
    small_bytes = (2 * Hp * G * whh_isz          # resident W_hh^T (double-buffer worst case)
                   + 4 * 2 * bt * Hp * 4         # h0, c0, h_n, c_n blocks
                   + 2 * bt * Hp * 4)            # h/c scratch carries
    per_step_bytes = 2 * bt * (G * xw_isz + Hp * 4)   # 2x-buffered xw-in + y-out per timestep
    if time_block is None:
        budget = int(0.45 * phys_vmem_floor) - small_bytes
        TR = int(max(1, min(T, 256, budget // max(per_step_bytes, 1))))
    else:
        TR = max(1, min(time_block, T))
    Tp = _round_up(T, TR)
    vmem_limit = int(min(max(small_bytes + TR * per_step_bytes + (2 << 20), 32 << 20), 56 << 20))

    # Partial unroll sized from vreg pressure: gates (bt, 4Hp) f32 = (bt/8)*(4Hp/128) vregs.
    gate_vregs = (bt // 8) * (G // 128)
    if gate_vregs <= 8:
        unroll = min(TR, 8)
    elif gate_vregs <= 16:
        unroll = min(TR, 4)
    else:
        unroll = min(TR, 2)

    # ---- initial state ----------------------------------------------------------------
    if hidden is None:
        h0 = jnp.zeros((B, H), jnp.float32)
        c0 = jnp.zeros((B, H), jnp.float32)
    else:
        h0 = hidden[0][0].astype(jnp.float32)
        c0 = hidden[1][0].astype(jnp.float32)
    h0p = jnp.pad(h0, ((0, Bp - B), (0, Hp - H)))
    c0p = jnp.pad(c0, ((0, Bp - B), (0, Hp - H)))

    # ---- gate-aligned, zero-padded weights (padding provably stays exactly 0) ----------
    w_ih_p = _scatter_gate_rows(w_ih, H, Hp)                          # (4Hp, I)
    w_hh_p = _scatter_gate_rows(w_hh, H, Hp)                          # (4Hp, H)
    w_hh_p = jnp.pad(w_hh_p, ((0, 0), (0, Hp - H)))                   # (4Hp, Hp)
    whh_t = jnp.transpose(w_hh_p).astype(matmul_dtype)                # (Hp, 4Hp)
    bias_p = _scatter_gate_rows(
        weights["b_ih"].astype(jnp.float32) + weights["b_hh"].astype(jnp.float32), H, Hp)

    # ---- hoisted input projection -------------------------------------------------------
    # Transpose x to time-major BEFORE the big matmul (cheap: I << 4Hp), so the output is
    # already (T, B, 4Hp) and XLA never materializes a (B,T,4Hp)->(T,B,4Hp) transpose.
    x_tm = jnp.transpose(x, (1, 0, 2)).reshape(T * B, I)
    xw = jnp.dot(x_tm.astype(matmul_dtype),
                 jnp.transpose(w_ih_p).astype(matmul_dtype),
                 preferred_element_type=jnp.float32) + bias_p          # (T*B, 4Hp) f32
    xw = xw.astype(xw_dtype).reshape(T, B, G)
    xw = jnp.pad(xw, ((0, Tp - T), (0, Bp - B), (0, 0)))               # (Tp, Bp, 4Hp)

    kernel = functools.partial(_lstm_recurrent_kernel, hp=Hp, tr=TR,
                               seq_len=T, needs_mask=(Tp != T), unroll=unroll)

    grid_spec = pltpu.PrefetchScalarGridSpec(
        num_scalar_prefetch=0,
        grid=(batch_tiles, Tp // TR),
        in_specs=[
            pl.BlockSpec((TR, bt, G), lambda b, t: (t, b, 0)),    # pre-activations (time-major)
            pl.BlockSpec((Hp, G), lambda b, t: (0, 0)),           # W_hh^T (resident)
            pl.BlockSpec((bt, Hp), lambda b, t: (b, 0)),          # h0
            pl.BlockSpec((bt, Hp), lambda b, t: (b, 0)),          # c0
        ],
        out_specs=[
            pl.BlockSpec((TR, bt, Hp), lambda b, t: (t, b, 0)),   # y (time-major, lane-dense)
            pl.BlockSpec((bt, Hp), lambda b, t: (b, 0)),          # h_n (written on last step)
            pl.BlockSpec((bt, Hp), lambda b, t: (b, 0)),          # c_n (written on last step)
        ],
        scratch_shapes=[
            pltpu.VMEM((bt, Hp), jnp.float32),                    # h carry across TR-blocks
            pltpu.VMEM((bt, Hp), jnp.float32),                    # c carry across TR-blocks
        ],
    )

    y_tm, h_n, c_n = pl.pallas_call(
        kernel,
        out_shape=(
            jax.ShapeDtypeStruct((Tp, Bp, Hp), jnp.float32),
            jax.ShapeDtypeStruct((Bp, Hp), jnp.float32),
            jax.ShapeDtypeStruct((Bp, Hp), jnp.float32),
        ),
        grid_spec=grid_spec,
        compiler_params=pltpu.CompilerParams(
            dimension_semantics=("parallel", "arbitrary"),   # batch tiles parallel, time serial
            vmem_limit_bytes=vmem_limit),
    )(xw, whh_t, h0p, c0p)

    # Module contract is batch_first output; consumers that accept time-major can skip this.
    lstm_output = jnp.transpose(y_tm[:T, :B, :H], (1, 0, 2))
    return lstm_output, (h_n[None, :B, :H], c_n[None, :B, :H])


def _lstm_reference(x, weights, hidden=None):
    """Pure-JAX reference matching torch.nn.LSTM forward (num_layers=1, batch_first)."""
    B, T, I = x.shape
    w_ih, w_hh = weights["w_ih"], weights["w_hh"]
    b = weights["b_ih"] + weights["b_hh"]
    H = w_hh.shape[1]
    if hidden is None:
        h = jnp.zeros((B, H), jnp.float32)
        c = jnp.zeros((B, H), jnp.float32)
    else:
        h, c = hidden[0][0], hidden[1][0]

    def step(carry, x_t):
        h, c = carry
        gates = x_t @ w_ih.T + h @ w_hh.T + b
        i = jax.nn.sigmoid(gates[:, 0 * H:1 * H])
        f = jax.nn.sigmoid(gates[:, 1 * H:2 * H])
        g = jnp.tanh(gates[:, 2 * H:3 * H])
        o = jax.nn.sigmoid(gates[:, 3 * H:4 * H])
        c = f * c + i * g
        h = o * jnp.tanh(c)
        return (h, c), h

    (h, c), ys = lax.scan(step, (h, c), jnp.transpose(x, (1, 0, 2)))
    return jnp.transpose(ys, (1, 0, 2)), (h[None], c[None])


def init_lstm_params(key, input_size, hidden_size):
    """Deterministic init matching torch.nn.LSTM shapes: U(-1/sqrt(H), 1/sqrt(H))."""
    k1, k2, k3, k4 = jax.random.split(key, 4)
    bound = 1.0 / np.sqrt(hidden_size)
    return {
        "w_ih": jax.random.uniform(k1, (4 * hidden_size, input_size),
                                   jnp.float32, -bound, bound),
        "w_hh": jax.random.uniform(k2, (4 * hidden_size, hidden_size),
                                   jnp.float32, -bound, bound),
        "b_ih": jax.random.uniform(k3, (4 * hidden_size,), jnp.float32, -bound, bound),
        "b_hh": jax.random.uniform(k4, (4 * hidden_size,), jnp.float32, -bound, bound),
    }


if __name__ == "__main__":
    B, T, INPUT_SIZE, HIDDEN_SIZE = 2, 8, 16, 32

    key = jax.random.PRNGKey(0)
    k_x, k_p, k_h, k_c, k_x2 = jax.random.split(key, 5)
    x = jax.random.normal(k_x, (B, T, INPUT_SIZE), jnp.float32)
    params = init_lstm_params(k_p, INPUT_SIZE, HIDDEN_SIZE)

    y_ref, (h_ref, c_ref) = _lstm_reference(x, params, hidden=None)

    # 1) f32 matmul path: tight check of exact LSTM semantics (hidden=None default).
    y32, (h32, c32) = lstm_memory_module(x, params, hidden=None, matmul_dtype=jnp.float32)
    jax.block_until_ready((y32, h32, c32))
    np.testing.assert_allclose(np.asarray(y32), np.asarray(y_ref), rtol=1e-4, atol=1e-4)
    np.testing.assert_allclose(np.asarray(h32), np.asarray(h_ref), rtol=1e-4, atol=1e-4)
    np.testing.assert_allclose(np.asarray(c32), np.asarray(c_ref), rtol=1e-4, atol=1e-4)

    # 2) user-provided hidden state path.
    h0 = jax.random.normal(k_h, (1, B, HIDDEN_SIZE), jnp.float32)
    c0 = jax.random.normal(k_c, (1, B, HIDDEN_SIZE), jnp.float32)
    yh, (hh, ch) = lstm_memory_module(x, params, hidden=(h0, c0), matmul_dtype=jnp.float32)
    jax.block_until_ready((yh, hh, ch))
    yh_ref, (hh_ref, ch_ref) = _lstm_reference(x, params, hidden=(h0, c0))
    np.testing.assert_allclose(np.asarray(yh), np.asarray(yh_ref), rtol=1e-4, atol=1e-4)
    np.testing.assert_allclose(np.asarray(hh), np.asarray(hh_ref), rtol=1e-4, atol=1e-4)
    np.testing.assert_allclose(np.asarray(ch), np.asarray(ch_ref), rtol=1e-4, atol=1e-4)

    # 3) default fast path: bf16 MXU operands + bf16 xw stream, f32 accumulation/state.
    y, (h_n, c_n) = lstm_memory_module(x, params, hidden=None)
    jax.block_until_ready((y, h_n, c_n))
    np.testing.assert_allclose(np.asarray(y), np.asarray(y_ref), rtol=5e-2, atol=5e-2)
    np.testing.assert_allclose(np.asarray(h_n), np.asarray(h_ref), rtol=5e-2, atol=5e-2)
    np.testing.assert_allclose(np.asarray(c_n), np.asarray(c_ref), rtol=5e-2, atol=5e-2)

    # 4) multi-batch-tile (parallel grid axis) + padded-time mask path.
    B2, T2 = 16, 5
    x2 = jax.random.normal(k_x2, (B2, T2, INPUT_SIZE), jnp.float32)
    y2, (h2, c2) = lstm_memory_module(x2, params, hidden=None,
                                      matmul_dtype=jnp.float32, time_block=4)
    jax.block_until_ready((y2, h2, c2))
    y2_ref, (h2_ref, c2_ref) = _lstm_reference(x2, params, hidden=None)
    np.testing.assert_allclose(np.asarray(y2), np.asarray(y2_ref), rtol=1e-4, atol=1e-4)
    np.testing.assert_allclose(np.asarray(h2), np.asarray(h2_ref), rtol=1e-4, atol=1e-4)
    np.testing.assert_allclose(np.asarray(c2), np.asarray(c2_ref), rtol=1e-4, atol=1e-4)

    print("KERNEL_OK")
</pallas_src>

<mosaic_0001>
module attributes {stable_mosaic.version = 11 : i64} {
  func.func @_lstm_recurrent_kernel(%arg0: i32, %arg1: i32, %arg2: memref<8x8x512xf32, #tpu.memory_space<vmem>>, %arg3: memref<128x512xf32, #tpu.memory_space<vmem>>, %arg4: memref<8x128xf32, #tpu.memory_space<vmem>>, %arg5: memref<8x128xf32, #tpu.memory_space<vmem>>, %arg6: memref<8x8x128xf32, #tpu.memory_space<vmem>>, %arg7: memref<8x128xf32, #tpu.memory_space<vmem>>, %arg8: memref<8x128xf32, #tpu.memory_space<vmem>>, %arg9: memref<8x128xf32, #tpu.memory_space<vmem>>, %arg10: memref<8x128xf32, #tpu.memory_space<vmem>>) attributes {dimension_semantics = [#tpu.dimension_semantics<parallel>, #tpu.dimension_semantics<arbitrary>], iteration_bounds = array<i64: 1, 1>, scalar_prefetch = 0 : i64, scratch_operands = 2 : i64, tpu.core_type = #tpu.core_type<tc>, window_params = [{transform_indices = @transform_0, window_bounds = array<i64: 8, 8, 512>}, {pipeline_mode = #tpu.pipeline_mode<synchronous>, transform_indices = @transform_1, window_bounds = array<i64: 128, 512>}, {transform_indices = @transform_2, window_bounds = array<i64: 8, 128>}, {transform_indices = @transform_3, window_bounds = array<i64: 8, 128>}, {transform_indices = @transform_4, window_bounds = array<i64: 8, 8, 128>}, {transform_indices = @transform_5, window_bounds = array<i64: 8, 128>}, {transform_indices = @transform_6, window_bounds = array<i64: 8, 128>}]} {
    %c0_i32 = arith.constant 0 : i32
    %0 = arith.cmpi eq, %arg1, %c0_i32 : i32
    %1 = arith.extui %0 : i1 to i32
    %c0_i32_0 = arith.constant 0 : i32
    %2 = arith.cmpi ne, %1, %c0_i32_0 : i32
    scf.if %2 {
      %c0_124 = arith.constant 0 : index
      %c0_125 = arith.constant 0 : index
      %331 = vector.load %arg4[%c0_124, %c0_125] : memref<8x128xf32, #tpu.memory_space<vmem>>, vector<8x128xf32>
      %c0_126 = arith.constant 0 : index
      %c0_127 = arith.constant 0 : index
      %332 = vector.load %arg9[%c0_126, %c0_127] : memref<8x128xf32, #tpu.memory_space<vmem>>, vector<8x128xf32>
      tpu.vector_store %arg9[%c0_126, %c0_127], %331 {strides = array<i32>} : memref<8x128xf32, #tpu.memory_space<vmem>>, vector<8x128xf32>,
      %c0_128 = arith.constant 0 : index
      %c0_129 = arith.constant 0 : index
      %333 = vector.load %arg5[%c0_128, %c0_129] : memref<8x128xf32, #tpu.memory_space<vmem>>, vector<8x128xf32>
      %c0_130 = arith.constant 0 : index
      %c0_131 = arith.constant 0 : index
      %334 = vector.load %arg10[%c0_130, %c0_131] : memref<8x128xf32, #tpu.memory_space<vmem>>, vector<8x128xf32>
      tpu.vector_store %arg10[%c0_130, %c0_131], %333 {strides = array<i32>} : memref<8x128xf32, #tpu.memory_space<vmem>>, vector<8x128xf32>,
    } else {
    }
    %c0 = arith.constant 0 : index
    %c0_1 = arith.constant 0 : index
    %3 = vector.load %arg3[%c0, %c0_1] : memref<128x512xf32, #tpu.memory_space<vmem>>, vector<128x512xf32>
    %c0_2 = arith.constant 0 : index
    %c0_3 = arith.constant 0 : index
    %4 = vector.load %arg9[%c0_2, %c0_3] : memref<8x128xf32, #tpu.memory_space<vmem>>, vector<8x128xf32>
    %c0_4 = arith.constant 0 : index
    %c0_5 = arith.constant 0 : index
    %5 = vector.load %arg10[%c0_4, %c0_5] : memref<8x128xf32, #tpu.memory_space<vmem>>, vector<8x128xf32>
    %c0_i32_6 = arith.constant 0 : i32
    %6 = arith.index_cast %c0_i32_6 : i32 to index
    %c0_7 = arith.constant 0 : index
    %c0_8 = arith.constant 0 : index
    %7 = vector.load %arg2[%6, %c0_7, %c0_8] : memref<8x8x512xf32, #tpu.memory_space<vmem>>, vector<1x8x512xf32>
    %8 = vector.shape_cast %7 : vector<1x8x512xf32> to vector<8x512xf32>
    %cst = arith.constant dense<0.000000e+00> : vector<8x512xf32>
    %9 = tpu.matmul %4, %3, %cst {dimension_numbers = #tpu.dot_dimension_numbers<[1], [0], [0], [1], [0, 0, 1, 1], [], []>} : vector<8x128xf32>, vector<128x512xf32>, vector<8x512xf32> -> vector<8x512xf32>
    %10 = arith.addf %8, %9 : vector<8x512xf32>
    %11 = vector.extract_strided_slice %10 {offsets = [0, 0], sizes = [8, 128], strides = [1, 1]} : vector<8x512xf32> to vector<8x128xf32>
    %cst_9 = arith.constant 5.000000e-01 : f32
    %12 = vector.broadcast %cst_9 : f32 to vector<8x128xf32>
    %13 = arith.mulf %12, %11 : vector<8x128xf32>
    %14 = math.tanh %13 : vector<8x128xf32>
    %cst_10 = arith.constant 1.000000e+00 : f32
    %15 = vector.broadcast %cst_10 : f32 to vector<8x128xf32>
    %16 = arith.addf %14, %15 : vector<8x128xf32>
    %cst_11 = arith.constant 5.000000e-01 : f32
    %17 = vector.broadcast %cst_11 : f32 to vector<8x128xf32>
    %18 = arith.mulf %17, %16 : vector<8x128xf32>
    %19 = vector.extract_strided_slice %10 {offsets = [0, 128], sizes = [8, 128], strides = [1, 1]} : vector<8x512xf32> to vector<8x128xf32>
    %cst_12 = arith.constant 5.000000e-01 : f32
    %20 = vector.broadcast %cst_12 : f32 to vector<8x128xf32>
    %21 = arith.mulf %20, %19 : vector<8x128xf32>
    %22 = math.tanh %21 : vector<8x128xf32>
    %cst_13 = arith.constant 1.000000e+00 : f32
    %23 = vector.broadcast %cst_13 : f32 to vector<8x128xf32>
    %24 = arith.addf %22, %23 : vector<8x128xf32>
    %cst_14 = arith.constant 5.000000e-01 : f32
    %25 = vector.broadcast %cst_14 : f32 to vector<8x128xf32>
    %26 = arith.mulf %25, %24 : vector<8x128xf32>
    %27 = vector.extract_strided_slice %10 {offsets = [0, 256], sizes = [8, 128], strides = [1, 1]} : vector<8x512xf32> to vector<8x128xf32>
    %28 = math.tanh %27 : vector<8x128xf32>
    %29 = vector.extract_strided_slice %10 {offsets = [0, 384], sizes = [8, 128], strides = [1, 1]} : vector<8x512xf32> to vector<8x128xf32>
    %cst_15 = arith.constant 5.000000e-01 : f32
    %30 = vector.broadcast %cst_15 : f32 to vector<8x128xf32>
    %31 = arith.mulf %30, %29 : vector<8x128xf32>
    %32 = math.tanh %31 : vector<8x128xf32>
    %cst_16 = arith.constant 1.000000e+00 : f32
    %33 = vector.broadcast %cst_16 : f32 to vector<8x128xf32>
    %34 = arith.addf %32, %33 : vector<8x128xf32>
    %cst_17 = arith.constant 5.000000e-01 : f32
    %35 = vector.broadcast %cst_17 : f32 to vector<8x128xf32>
    %36 = arith.mulf %35, %34 : vector<8x128xf32>
    %37 = arith.mulf %26, %5 : vector<8x128xf32>
    %38 = arith.mulf %18, %28 : vector<8x128xf32>
    %39 = arith.addf %37, %38 : vector<8x128xf32>
    %40 = math.tanh %39 : vector<8x128xf32>
    %41 = arith.mulf %36, %40 : vector<8x128xf32>
    %42 = arith.index_cast %c0_i32_6 : i32 to index
    %c0_18 = arith.constant 0 : index
    %c0_19 = arith.constant 0 : index
    %43 = vector.load %arg6[%42, %c0_18, %c0_19] : memref<8x8x128xf32, #tpu.memory_space<vmem>>, vector<1x8x128xf32>
    %44 = vector.shape_cast %43 : vector<1x8x128xf32> to vector<8x128xf32>
    %45 = vector.shape_cast %41 : vector<8x128xf32> to vector<1x8x128xf32>
    tpu.vector_store %arg6[%42, %c0_18, %c0_19], %45 {strides = array<i32>} : memref<8x8x128xf32, #tpu.memory_space<vmem>>, vector<1x8x128xf32>,
    %c1_i32 = arith.constant 1 : i32
    %46 = arith.index_cast %c1_i32 : i32 to index
    %c0_20 = arith.constant 0 : index
    %c0_21 = arith.constant 0 : index
    %47 = vector.load %arg2[%46, %c0_20, %c0_21] : memref<8x8x512xf32, #tpu.memory_space<vmem>>, vector<1x8x512xf32>
    %48 = vector.shape_cast %47 : vector<1x8x512xf32> to vector<8x512xf32>
    %cst_22 = arith.constant dense<0.000000e+00> : vector<8x512xf32>
    %49 = tpu.matmul %41, %3, %cst_22 {dimension_numbers = #tpu.dot_dimension_numbers<[1], [0], [0], [1], [0, 0, 1, 1], [], []>} : vector<8x128xf32>, vector<128x512xf32>, vector<8x512xf32> -> vector<8x512xf32>
    %50 = arith.addf %48, %49 : vector<8x512xf32>
    %51 = vector.extract_strided_slice %50 {offsets = [0, 0], sizes = [8, 128], strides = [1, 1]} : vector<8x512xf32> to vector<8x128xf32>
    %cst_23 = arith.constant 5.000000e-01 : f32
    %52 = vector.broadcast %cst_23 : f32 to vector<8x128xf32>
    %53 = arith.mulf %52, %51 : vector<8x128xf32>
    %54 = math.tanh %53 : vector<8x128xf32>
    %cst_24 = arith.constant 1.000000e+00 : f32
    %55 = vector.broadcast %cst_24 : f32 to vector<8x128xf32>
    %56 = arith.addf %54, %55 : vector<8x128xf32>
    %cst_25 = arith.constant 5.000000e-01 : f32
    %57 = vector.broadcast %cst_25 : f32 to vector<8x128xf32>
    %58 = arith.mulf %57, %56 : vector<8x128xf32>
    %59 = vector.extract_strided_slice %50 {offsets = [0, 128], sizes = [8, 128], strides = [1, 1]} : vector<8x512xf32> to vector<8x128xf32>
    %cst_26 = arith.constant 5.000000e-01 : f32
    %60 = vector.broadcast %cst_26 : f32 to vector<8x128xf32>
    %61 = arith.mulf %60, %59 : vector<8x128xf32>
    %62 = math.tanh %61 : vector<8x128xf32>
    %cst_27 = arith.constant 1.000000e+00 : f32
    %63 = vector.broadcast %cst_27 : f32 to vector<8x128xf32>
    %64 = arith.addf %62, %63 : vector<8x128xf32>
    %cst_28 = arith.constant 5.000000e-01 : f32
    %65 = vector.broadcast %cst_28 : f32 to vector<8x128xf32>
    %66 = arith.mulf %65, %64 : vector<8x128xf32>
    %67 = vector.extract_strided_slice %50 {offsets = [0, 256], sizes = [8, 128], strides = [1, 1]} : vector<8x512xf32> to vector<8x128xf32>
    %68 = math.tanh %67 : vector<8x128xf32>
    %69 = vector.extract_strided_slice %50 {offsets = [0, 384], sizes = [8, 128], strides = [1, 1]} : vector<8x512xf32> to vector<8x128xf32>
    %cst_29 = arith.constant 5.000000e-01 : f32
    %70 = vector.broadcast %cst_29 : f32 to vector<8x128xf32>
    %71 = arith.mulf %70, %69 : vector<8x128xf32>
    %72 = math.tanh %71 : vector<8x128xf32>
    %cst_30 = arith.constant 1.000000e+00 : f32
    %73 = vector.broadcast %cst_30 : f32 to vector<8x128xf32>
    %74 = arith.addf %72, %73 : vector<8x128xf32>
    %cst_31 = arith.constant 5.000000e-01 : f32
    %75 = vector.broadcast %cst_31 : f32 to vector<8x128xf32>
    %76 = arith.mulf %75, %74 : vector<8x128xf32>
    %77 = arith.mulf %66, %39 : vector<8x128xf32>
    %78 = arith.mulf %58, %68 : vector<8x128xf32>
    %79 = arith.addf %77, %78 : vector<8x128xf32>
    %80 = math.tanh %79 : vector<8x128xf32>
    %81 = arith.mulf %76, %80 : vector<8x128xf32>
    %82 = arith.index_cast %c1_i32 : i32 to index
    %c0_32 = arith.constant 0 : index
    %c0_33 = arith.constant 0 : index
    %83 = vector.load %arg6[%82, %c0_32, %c0_33] : memref<8x8x128xf32, #tpu.memory_space<vmem>>, vector<1x8x128xf32>
    %84 = vector.shape_cast %83 : vector<1x8x128xf32> to vector<8x128xf32>
    %85 = vector.shape_cast %81 : vector<8x128xf32> to vector<1x8x128xf32>
    tpu.vector_store %arg6[%82, %c0_32, %c0_33], %85 {strides = array<i32>} : memref<8x8x128xf32, #tpu.memory_space<vmem>>, vector<1x8x128xf32>,
    %c2_i32 = arith.constant 2 : i32
    %86 = arith.index_cast %c2_i32 : i32 to index
    %c0_34 = arith.constant 0 : index
    %c0_35 = arith.constant 0 : index
    %87 = vector.load %arg2[%86, %c0_34, %c0_35] : memref<8x8x512xf32, #tpu.memory_space<vmem>>, vector<1x8x512xf32>
    %88 = vector.shape_cast %87 : vector<1x8x512xf32> to vector<8x512xf32>
    %cst_36 = arith.constant dense<0.000000e+00> : vector<8x512xf32>
    %89 = tpu.matmul %81, %3, %cst_36 {dimension_numbers = #tpu.dot_dimension_numbers<[1], [0], [0], [1], [0, 0, 1, 1], [], []>} : vector<8x128xf32>, vector<128x512xf32>, vector<8x512xf32> -> vector<8x512xf32>
    %90 = arith.addf %88, %89 : vector<8x512xf32>
    %91 = vector.extract_strided_slice %90 {offsets = [0, 0], sizes = [8, 128], strides = [1, 1]} : vector<8x512xf32> to vector<8x128xf32>
    %cst_37 = arith.constant 5.000000e-01 : f32
    %92 = vector.broadcast %cst_37 : f32 to vector<8x128xf32>
    %93 = arith.mulf %92, %91 : vector<8x128xf32>
    %94 = math.tanh %93 : vector<8x128xf32>
    %cst_38 = arith.constant 1.000000e+00 : f32
    %95 = vector.broadcast %cst_38 : f32 to vector<8x128xf32>
    %96 = arith.addf %94, %95 : vector<8x128xf32>
    %cst_39 = arith.constant 5.000000e-01 : f32
    %97 = vector.broadcast %cst_39 : f32 to vector<8x128xf32>
    %98 = arith.mulf %97, %96 : vector<8x128xf32>
    %99 = vector.extract_strided_slice %90 {offsets = [0, 128], sizes = [8, 128], strides = [1, 1]} : vector<8x512xf32> to vector<8x128xf32>
    %cst_40 = arith.constant 5.000000e-01 : f32
    %100 = vector.broadcast %cst_40 : f32 to vector<8x128xf32>
    %101 = arith.mulf %100, %99 : vector<8x128xf32>
    %102 = math.tanh %101 : vector<8x128xf32>
    %cst_41 = arith.constant 1.000000e+00 : f32
    %103 = vector.broadcast %cst_41 : f32 to vector<8x128xf32>
    %104 = arith.addf %102, %103 : vector<8x128xf32>
    %cst_42 = arith.constant 5.000000e-01 : f32
    %105 = vector.broadcast %cst_42 : f32 to vector<8x128xf32>
    %106 = arith.mulf %105, %104 : vector<8x128xf32>
    %107 = vector.extract_strided_slice %90 {offsets = [0, 256], sizes = [8, 128], strides = [1, 1]} : vector<8x512xf32> to vector<8x128xf32>
    %108 = math.tanh %107 : vector<8x128xf32>
    %109 = vector.extract_strided_slice %90 {offsets = [0, 384], sizes = [8, 128], strides = [1, 1]} : vector<8x512xf32> to vector<8x128xf32>
    %cst_43 = arith.constant 5.000000e-01 : f32
    %110 = vector.broadcast %cst_43 : f32 to vector<8x128xf32>
    %111 = arith.mulf %110, %109 : vector<8x128xf32>
    %112 = math.tanh %111 : vector<8x128xf32>
    %cst_44 = arith.constant 1.000000e+00 : f32
    %113 = vector.broadcast %cst_44 : f32 to vector<8x128xf32>
    %114 = arith.addf %112, %113 : vector<8x128xf32>
    %cst_45 = arith.constant 5.000000e-01 : f32
    %115 = vector.broadcast %cst_45 : f32 to vector<8x128xf32>
    %116 = arith.mulf %115, %114 : vector<8x128xf32>
    %117 = arith.mulf %106, %79 : vector<8x128xf32>
    %118 = arith.mulf %98, %108 : vector<8x128xf32>
    %119 = arith.addf %117, %118 : vector<8x128xf32>
    %120 = math.tanh %119 : vector<8x128xf32>
    %121 = arith.mulf %116, %120 : vector<8x128xf32>
    %122 = arith.index_cast %c2_i32 : i32 to index
    %c0_46 = arith.constant 0 : index
    %c0_47 = arith.constant 0 : index
    %123 = vector.load %arg6[%122, %c0_46, %c0_47] : memref<8x8x128xf32, #tpu.memory_space<vmem>>, vector<1x8x128xf32>
    %124 = vector.shape_cast %123 : vector<1x8x128xf32> to vector<8x128xf32>
    %125 = vector.shape_cast %121 : vector<8x128xf32> to vector<1x8x128xf32>
    tpu.vector_store %arg6[%122, %c0_46, %c0_47], %125 {strides = array<i32>} : memref<8x8x128xf32, #tpu.memory_space<vmem>>, vector<1x8x128xf32>,
    %c3_i32 = arith.constant 3 : i32
    %126 = arith.index_cast %c3_i32 : i32 to index
    %c0_48 = arith.constant 0 : index
    %c0_49 = arith.constant 0 : index
    %127 = vector.load %arg2[%126, %c0_48, %c0_49] : memref<8x8x512xf32, #tpu.memory_space<vmem>>, vector<1x8x512xf32>
    %128 = vector.shape_cast %127 : vector<1x8x512xf32> to vector<8x512xf32>
    %cst_50 = arith.constant dense<0.000000e+00> : vector<8x512xf32>
    %129 = tpu.matmul %121, %3, %cst_50 {dimension_numbers = #tpu.dot_dimension_numbers<[1], [0], [0], [1], [0, 0, 1, 1], [], []>} : vector<8x128xf32>, vector<128x512xf32>, vector<8x512xf32> -> vector<8x512xf32>
    %130 = arith.addf %128, %129 : vector<8x512xf32>
    %131 = vector.extract_strided_slice %130 {offsets = [0, 0], sizes = [8, 128], strides = [1, 1]} : vector<8x512xf32> to vector<8x128xf32>
    %cst_51 = arith.constant 5.000000e-01 : f32
    %132 = vector.broadcast %cst_51 : f32 to vector<8x128xf32>
    %133 = arith.mulf %132, %131 : vector<8x128xf32>
    %134 = math.tanh %133 : vector<8x128xf32>
    %cst_52 = arith.constant 1.000000e+00 : f32
    %135 = vector.broadcast %cst_52 : f32 to vector<8x128xf32>
    %136 = arith.addf %134, %135 : vector<8x128xf32>
    %cst_53 = arith.constant 5.000000e-01 : f32
    %137 = vector.broadcast %cst_53 : f32 to vector<8x128xf32>
    %138 = arith.mulf %137, %136 : vector<8x128xf32>
    %139 = vector.extract_strided_slice %130 {offsets = [0, 128], sizes = [8, 128], strides = [1, 1]} : vector<8x512xf32> to vector<8x128xf32>
    %cst_54 = arith.constant 5.000000e-01 : f32
    %140 = vector.broadcast %cst_54 : f32 to vector<8x128xf32>
    %141 = arith.mulf %140, %139 : vector<8x128xf32>
    %142 = math.tanh %141 : vector<8x128xf32>
    %cst_55 = arith.constant 1.000000e+00 : f32
    %143 = vector.broadcast %cst_55 : f32 to vector<8x128xf32>
    %144 = arith.addf %142, %143 : vector<8x128xf32>
    %cst_56 = arith.constant 5.000000e-01 : f32
    %145 = vector.broadcast %cst_56 : f32 to vector<8x128xf32>
    %146 = arith.mulf %145, %144 : vector<8x128xf32>
    %147 = vector.extract_strided_slice %130 {offsets = [0, 256], sizes = [8, 128], strides = [1, 1]} : vector<8x512xf32> to vector<8x128xf32>
    %148 = math.tanh %147 : vector<8x128xf32>
    %149 = vector.extract_strided_slice %130 {offsets = [0, 384], sizes = [8, 128], strides = [1, 1]} : vector<8x512xf32> to vector<8x128xf32>
    %cst_57 = arith.constant 5.000000e-01 : f32
    %150 = vector.broadcast %cst_57 : f32 to vector<8x128xf32>
    %151 = arith.mulf %150, %149 : vector<8x128xf32>
    %152 = math.tanh %151 : vector<8x128xf32>
    %cst_58 = arith.constant 1.000000e+00 : f32
    %153 = vector.broadcast %cst_58 : f32 to vector<8x128xf32>
    %154 = arith.addf %152, %153 : vector<8x128xf32>
    %cst_59 = arith.constant 5.000000e-01 : f32
    %155 = vector.broadcast %cst_59 : f32 to vector<8x128xf32>
    %156 = arith.mulf %155, %154 : vector<8x128xf32>
    %157 = arith.mulf %146, %119 : vector<8x128xf32>
    %158 = arith.mulf %138, %148 : vector<8x128xf32>
    %159 = arith.addf %157, %158 : vector<8x128xf32>
    %160 = math.tanh %159 : vector<8x128xf32>
    %161 = arith.mulf %156, %160 : vector<8x128xf32>
    %162 = arith.index_cast %c3_i32 : i32 to index
    %c0_60 = arith.constant 0 : index
    %c0_61 = arith.constant 0 : index
    %163 = vector.load %arg6[%162, %c0_60, %c0_61] : memref<8x8x128xf32, #tpu.memory_space<vmem>>, vector<1x8x128xf32>
    %164 = vector.shape_cast %163 : vector<1x8x128xf32> to vector<8x128xf32>
    %165 = vector.shape_cast %161 : vector<8x128xf32> to vector<1x8x128xf32>
    tpu.vector_store %arg6[%162, %c0_60, %c0_61], %165 {strides = array<i32>} : memref<8x8x128xf32, #tpu.memory_space<vmem>>, vector<1x8x128xf32>,
    %c4_i32 = arith.constant 4 : i32
    %166 = arith.index_cast %c4_i32 : i32 to index
    %c0_62 = arith.constant 0 : index
    %c0_63 = arith.constant 0 : index
    %167 = vector.load %arg2[%166, %c0_62, %c0_63] : memref<8x8x512xf32, #tpu.memory_space<vmem>>, vector<1x8x512xf32>
    %168 = vector.shape_cast %167 : vector<1x8x512xf32> to vector<8x512xf32>
    %cst_64 = arith.constant dense<0.000000e+00> : vector<8x512xf32>
    %169 = tpu.matmul %161, %3, %cst_64 {dimension_numbers = #tpu.dot_dimension_numbers<[1], [0], [0], [1], [0, 0, 1, 1], [], []>} : vector<8x128xf32>, vector<128x512xf32>, vector<8x512xf32> -> vector<8x512xf32>
    %170 = arith.addf %168, %169 : vector<8x512xf32>
    %171 = vector.extract_strided_slice %170 {offsets = [0, 0], sizes = [8, 128], strides = [1, 1]} : vector<8x512xf32> to vector<8x128xf32>
    %cst_65 = arith.constant 5.000000e-01 : f32
    %172 = vector.broadcast %cst_65 : f32 to vector<8x128xf32>
    %173 = arith.mulf %172, %171 : vector<8x128xf32>
    %174 = math.tanh %173 : vector<8x128xf32>
    %cst_66 = arith.constant 1.000000e+00 : f32
    %175 = vector.broadcast %cst_66 : f32 to vector<8x128xf32>
    %176 = arith.addf %174, %175 : vector<8x128xf32>
    %cst_67 = arith.constant 5.000000e-01 : f32
    %177 = vector.broadcast %cst_67 : f32 to vector<8x128xf32>
    %178 = arith.mulf %177, %176 : vector<8x128xf32>
    %179 = vector.extract_strided_slice %170 {offsets = [0, 128], sizes = [8, 128], strides = [1, 1]} : vector<8x512xf32> to vector<8x128xf32>
    %cst_68 = arith.constant 5.000000e-01 : f32
    %180 = vector.broadcast %cst_68 : f32 to vector<8x128xf32>
    %181 = arith.mulf %180, %179 : vector<8x128xf32>
    %182 = math.tanh %181 : vector<8x128xf32>
    %cst_69 = arith.constant 1.000000e+00 : f32
    %183 = vector.broadcast %cst_69 : f32 to vector<8x128xf32>
    %184 = arith.addf %182, %183 : vector<8x128xf32>
    %cst_70 = arith.constant 5.000000e-01 : f32
    %185 = vector.broadcast %cst_70 : f32 to vector<8x128xf32>
    %186 = arith.mulf %185, %184 : vector<8x128xf32>
    %187 = vector.extract_strided_slice %170 {offsets = [0, 256], sizes = [8, 128], strides = [1, 1]} : vector<8x512xf32> to vector<8x128xf32>
    %188 = math.tanh %187 : vector<8x128xf32>
    %189 = vector.extract_strided_slice %170 {offsets = [0, 384], sizes = [8, 128], strides = [1, 1]} : vector<8x512xf32> to vector<8x128xf32>
    %cst_71 = arith.constant 5.000000e-01 : f32
    %190 = vector.broadcast %cst_71 : f32 to vector<8x128xf32>
    %191 = arith.mulf %190, %189 : vector<8x128xf32>
    %192 = math.tanh %191 : vector<8x128xf32>
    %cst_72 = arith.constant 1.000000e+00 : f32
    %193 = vector.broadcast %cst_72 : f32 to vector<8x128xf32>
    %194 = arith.addf %192, %193 : vector<8x128xf32>
    %cst_73 = arith.constant 5.000000e-01 : f32
    %195 = vector.broadcast %cst_73 : f32 to vector<8x128xf32>
    %196 = arith.mulf %195, %194 : vector<8x128xf32>
    %197 = arith.mulf %186, %159 : vector<8x128xf32>
    %198 = arith.mulf %178, %188 : vector<8x128xf32>
    %199 = arith.addf %197, %198 : vector<8x128xf32>
    %200 = math.tanh %199 : vector<8x128xf32>
    %201 = arith.mulf %196, %200 : vector<8x128xf32>
    %202 = arith.index_cast %c4_i32 : i32 to index
    %c0_74 = arith.constant 0 : index
    %c0_75 = arith.constant 0 : index
    %203 = vector.load %arg6[%202, %c0_74, %c0_75] : memref<8x8x128xf32, #tpu.memory_space<vmem>>, vector<1x8x128xf32>
    %204 = vector.shape_cast %203 : vector<1x8x128xf32> to vector<8x128xf32>
    %205 = vector.shape_cast %201 : vector<8x128xf32> to vector<1x8x128xf32>
    tpu.vector_store %arg6[%202, %c0_74, %c0_75], %205 {strides = array<i32>} : memref<8x8x128xf32, #tpu.memory_space<vmem>>, vector<1x8x128xf32>,
    %c5_i32 = arith.constant 5 : i32
    %206 = arith.index_cast %c5_i32 : i32 to index
    %c0_76 = arith.constant 0 : index
    %c0_77 = arith.constant 0 : index
    %207 = vector.load %arg2[%206, %c0_76, %c0_77] : memref<8x8x512xf32, #tpu.memory_space<vmem>>, vector<1x8x512xf32>
    %208 = vector.shape_cast %207 : vector<1x8x512xf32> to vector<8x512xf32>
    %cst_78 = arith.constant dense<0.000000e+00> : vector<8x512xf32>
    %209 = tpu.matmul %201, %3, %cst_78 {dimension_numbers = #tpu.dot_dimension_numbers<[1], [0], [0], [1], [0, 0, 1, 1], [], []>} : vector<8x128xf32>, vector<128x512xf32>, vector<8x512xf32> -> vector<8x512xf32>
    %210 = arith.addf %208, %209 : vector<8x512xf32>
    %211 = vector.extract_strided_slice %210 {offsets = [0, 0], sizes = [8, 128], strides = [1, 1]} : vector<8x512xf32> to vector<8x128xf32>
    %cst_79 = arith.constant 5.000000e-01 : f32
    %212 = vector.broadcast %cst_79 : f32 to vector<8x128xf32>
    %213 = arith.mulf %212, %211 : vector<8x128xf32>
    %214 = math.tanh %213 : vector<8x128xf32>
    %cst_80 = arith.constant 1.000000e+00 : f32
    %215 = vector.broadcast %cst_80 : f32 to vector<8x128xf32>
    %216 = arith.addf %214, %215 : vector<8x128xf32>
    %cst_81 = arith.constant 5.000000e-01 : f32
    %217 = vector.broadcast %cst_81 : f32 to vector<8x128xf32>
    %218 = arith.mulf %217, %216 : vector<8x128xf32>
    %219 = vector.extract_strided_slice %210 {offsets = [0, 128], sizes = [8, 128], strides = [1, 1]} : vector<8x512xf32> to vector<8x128xf32>
    %cst_82 = arith.constant 5.000000e-01 : f32
    %220 = vector.broadcast %cst_82 : f32 to vector<8x128xf32>
    %221 = arith.mulf %220, %219 : vector<8x128xf32>
    %222 = math.tanh %221 : vector<8x128xf32>
    %cst_83 = arith.constant 1.000000e+00 : f32
    %223 = vector.broadcast %cst_83 : f32 to vector<8x128xf32>
    %224 = arith.addf %222, %223 : vector<8x128xf32>
    %cst_84 = arith.constant 5.000000e-01 : f32
    %225 = vector.broadcast %cst_84 : f32 to vector<8x128xf32>
    %226 = arith.mulf %225, %224 : vector<8x128xf32>
    %227 = vector.extract_strided_slice %210 {offsets = [0, 256], sizes = [8, 128], strides = [1, 1]} : vector<8x512xf32> to vector<8x128xf32>
    %228 = math.tanh %227 : vector<8x128xf32>
    %229 = vector.extract_strided_slice %210 {offsets = [0, 384], sizes = [8, 128], strides = [1, 1]} : vector<8x512xf32> to vector<8x128xf32>
    %cst_85 = arith.constant 5.000000e-01 : f32
    %230 = vector.broadcast %cst_85 : f32 to vector<8x128xf32>
    %231 = arith.mulf %230, %229 : vector<8x128xf32>
    %232 = math.tanh %231 : vector<8x128xf32>
    %cst_86 = arith.constant 1.000000e+00 : f32
    %233 = vector.broadcast %cst_86 : f32 to vector<8x128xf32>
    %234 = arith.addf %232, %233 : vector<8x128xf32>
    %cst_87 = arith.constant 5.000000e-01 : f32
    %235 = vector.broadcast %cst_87 : f32 to vector<8x128xf32>
    %236 = arith.mulf %235, %234 : vector<8x128xf32>
    %237 = arith.mulf %226, %199 : vector<8x128xf32>
    %238 = arith.mulf %218, %228 : vector<8x128xf32>
    %239 = arith.addf %237, %238 : vector<8x128xf32>
    %240 = math.tanh %239 : vector<8x128xf32>
    %241 = arith.mulf %236, %240 : vector<8x128xf32>
    %242 = arith.index_cast %c5_i32 : i32 to index
    %c0_88 = arith.constant 0 : index
    %c0_89 = arith.constant 0 : index
    %243 = vector.load %arg6[%242, %c0_88, %c0_89] : memref<8x8x128xf32, #tpu.memory_space<vmem>>, vector<1x8x128xf32>
    %244 = vector.shape_cast %243 : vector<1x8x128xf32> to vector<8x128xf32>
    %245 = vector.shape_cast %241 : vector<8x128xf32> to vector<1x8x128xf32>
    tpu.vector_store %arg6[%242, %c0_88, %c0_89], %245 {strides = array<i32>} : memref<8x8x128xf32, #tpu.memory_space<vmem>>, vector<1x8x128xf32>,
    %c6_i32 = arith.constant 6 : i32
    %246 = arith.index_cast %c6_i32 : i32 to index
    %c0_90 = arith.constant 0 : index
    %c0_91 = arith.constant 0 : index
    %247 = vector.load %arg2[%246, %c0_90, %c0_91] : memref<8x8x512xf32, #tpu.memory_space<vmem>>, vector<1x8x512xf32>
    %248 = vector.shape_cast %247 : vector<1x8x512xf32> to vector<8x512xf32>
    %cst_92 = arith.constant dense<0.000000e+00> : vector<8x512xf32>
    %249 = tpu.matmul %241, %3, %cst_92 {dimension_numbers = #tpu.dot_dimension_numbers<[1], [0], [0], [1], [0, 0, 1, 1], [], []>} : vector<8x128xf32>, vector<128x512xf32>, vector<8x512xf32> -> vector<8x512xf32>
    %250 = arith.addf %248, %249 : vector<8x512xf32>
    %251 = vector.extract_strided_slice %250 {offsets = [0, 0], sizes = [8, 128], strides = [1, 1]} : vector<8x512xf32> to vector<8x128xf32>
    %cst_93 = arith.constant 5.000000e-01 : f32
    %252 = vector.broadcast %cst_93 : f32 to vector<8x128xf32>
    %253 = arith.mulf %252, %251 : vector<8x128xf32>
    %254 = math.tanh %253 : vector<8x128xf32>
    %cst_94 = arith.constant 1.000000e+00 : f32
    %255 = vector.broadcast %cst_94 : f32 to vector<8x128xf32>
    %256 = arith.addf %254, %255 : vector<8x128xf32>
    %cst_95 = arith.constant 5.000000e-01 : f32
    %257 = vector.broadcast %cst_95 : f32 to vector<8x128xf32>
    %258 = arith.mulf %257, %256 : vector<8x128xf32>
    %259 = vector.extract_strided_slice %250 {offsets = [0, 128], sizes = [8, 128], strides = [1, 1]} : vector<8x512xf32> to vector<8x128xf32>
    %cst_96 = arith.constant 5.000000e-01 : f32
    %260 = vector.broadcast %cst_96 : f32 to vector<8x128xf32>
    %261 = arith.mulf %260, %259 : vector<8x128xf32>
    %262 = math.tanh %261 : vector<8x128xf32>
    %cst_97 = arith.constant 1.000000e+00 : f32
    %263 = vector.broadcast %cst_97 : f32 to vector<8x128xf32>
    %264 = arith.addf %262, %263 : vector<8x128xf32>
    %cst_98 = arith.constant 5.000000e-01 : f32
    %265 = vector.broadcast %cst_98 : f32 to vector<8x128xf32>
    %266 = arith.mulf %265, %264 : vector<8x128xf32>
    %267 = vector.extract_strided_slice %250 {offsets = [0, 256], sizes = [8, 128], strides = [1, 1]} : vector<8x512xf32> to vector<8x128xf32>
    %268 = math.tanh %267 : vector<8x128xf32>
    %269 = vector.extract_strided_slice %250 {offsets = [0, 384], sizes = [8, 128], strides = [1, 1]} : vector<8x512xf32> to vector<8x128xf32>
    %cst_99 = arith.constant 5.000000e-01 : f32
    %270 = vector.broadcast %cst_99 : f32 to vector<8x128xf32>
    %271 = arith.mulf %270, %269 : vector<8x128xf32>
    %272 = math.tanh %271 : vector<8x128xf32>
    %cst_100 = arith.constant 1.000000e+00 : f32
    %273 = vector.broadcast %cst_100 : f32 to vector<8x128xf32>
    %274 = arith.addf %272, %273 : vector<8x128xf32>
    %cst_101 = arith.constant 5.000000e-01 : f32
    %275 = vector.broadcast %cst_101 : f32 to vector<8x128xf32>
    %276 = arith.mulf %275, %274 : vector<8x128xf32>
    %277 = arith.mulf %266, %239 : vector<8x128xf32>
    %278 = arith.mulf %258, %268 : vector<8x128xf32>
    %279 = arith.addf %277, %278 : vector<8x128xf32>
    %280 = math.tanh %279 : vector<8x128xf32>
    %281 = arith.mulf %276, %280 : vector<8x128xf32>
    %282 = arith.index_cast %c6_i32 : i32 to index
    %c0_102 = arith.constant 0 : index
    %c0_103 = arith.constant 0 : index
    %283 = vector.load %arg6[%282, %c0_102, %c0_103] : memref<8x8x128xf32, #tpu.memory_space<vmem>>, vector<1x8x128xf32>
    %284 = vector.shape_cast %283 : vector<1x8x128xf32> to vector<8x128xf32>
    %285 = vector.shape_cast %281 : vector<8x128xf32> to vector<1x8x128xf32>
    tpu.vector_store %arg6[%282, %c0_102, %c0_103], %285 {strides = array<i32>} : memref<8x8x128xf32, #tpu.memory_space<vmem>>, vector<1x8x128xf32>,
    %c7_i32 = arith.constant 7 : i32
    %286 = arith.index_cast %c7_i32 : i32 to index
    %c0_104 = arith.constant 0 : index
    %c0_105 = arith.constant 0 : index
    %287 = vector.load %arg2[%286, %c0_104, %c0_105] : memref<8x8x512xf32, #tpu.memory_space<vmem>>, vector<1x8x512xf32>
    %288 = vector.shape_cast %287 : vector<1x8x512xf32> to vector<8x512xf32>
    %cst_106 = arith.constant dense<0.000000e+00> : vector<8x512xf32>
    %289 = tpu.matmul %281, %3, %cst_106 {dimension_numbers = #tpu.dot_dimension_numbers<[1], [0], [0], [1], [0, 0, 1, 1], [], []>} : vector<8x128xf32>, vector<128x512xf32>, vector<8x512xf32> -> vector<8x512xf32>
    %290 = arith.addf %288, %289 : vector<8x512xf32>
    %291 = vector.extract_strided_slice %290 {offsets = [0, 0], sizes = [8, 128], strides = [1, 1]} : vector<8x512xf32> to vector<8x128xf32>
    %cst_107 = arith.constant 5.000000e-01 : f32
    %292 = vector.broadcast %cst_107 : f32 to vector<8x128xf32>
    %293 = arith.mulf %292, %291 : vector<8x128xf32>
    %294 = math.tanh %293 : vector<8x128xf32>
    %cst_108 = arith.constant 1.000000e+00 : f32
    %295 = vector.broadcast %cst_108 : f32 to vector<8x128xf32>
    %296 = arith.addf %294, %295 : vector<8x128xf32>
    %cst_109 = arith.constant 5.000000e-01 : f32
    %297 = vector.broadcast %cst_109 : f32 to vector<8x128xf32>
    %298 = arith.mulf %297, %296 : vector<8x128xf32>
    %299 = vector.extract_strided_slice %290 {offsets = [0, 128], sizes = [8, 128], strides = [1, 1]} : vector<8x512xf32> to vector<8x128xf32>
    %cst_110 = arith.constant 5.000000e-01 : f32
    %300 = vector.broadcast %cst_110 : f32 to vector<8x128xf32>
    %301 = arith.mulf %300, %299 : vector<8x128xf32>
    %302 = math.tanh %301 : vector<8x128xf32>
    %cst_111 = arith.constant 1.000000e+00 : f32
    %303 = vector.broadcast %cst_111 : f32 to vector<8x128xf32>
    %304 = arith.addf %302, %303 : vector<8x128xf32>
    %cst_112 = arith.constant 5.000000e-01 : f32
    %305 = vector.broadcast %cst_112 : f32 to vector<8x128xf32>
    %306 = arith.mulf %305, %304 : vector<8x128xf32>
    %307 = vector.extract_strided_slice %290 {offsets = [0, 256], sizes = [8, 128], strides = [1, 1]} : vector<8x512xf32> to vector<8x128xf32>
    %308 = math.tanh %307 : vector<8x128xf32>
    %309 = vector.extract_strided_slice %290 {offsets = [0, 384], sizes = [8, 128], strides = [1, 1]} : vector<8x512xf32> to vector<8x128xf32>
    %cst_113 = arith.constant 5.000000e-01 : f32
    %310 = vector.broadcast %cst_113 : f32 to vector<8x128xf32>
    %311 = arith.mulf %310, %309 : vector<8x128xf32>
    %312 = math.tanh %311 : vector<8x128xf32>
    %cst_114 = arith.constant 1.000000e+00 : f32
    %313 = vector.broadcast %cst_114 : f32 to vector<8x128xf32>
    %314 = arith.addf %312, %313 : vector<8x128xf32>
    %cst_115 = arith.constant 5.000000e-01 : f32
    %315 = vector.broadcast %cst_115 : f32 to vector<8x128xf32>
    %316 = arith.mulf %315, %314 : vector<8x128xf32>
    %317 = arith.mulf %306, %279 : vector<8x128xf32>
    %318 = arith.mulf %298, %308 : vector<8x128xf32>
    %319 = arith.addf %317, %318 : vector<8x128xf32>
    %320 = math.tanh %319 : vector<8x128xf32>
    %321 = arith.mulf %316, %320 : vector<8x128xf32>
    %322 = arith.index_cast %c7_i32 : i32 to index
    %c0_116 = arith.constant 0 : index
    %c0_117 = arith.constant 0 : index
    %323 = vector.load %arg6[%322, %c0_116, %c0_117] : memref<8x8x128xf32, #tpu.memory_space<vmem>>, vector<1x8x128xf32>
    %324 = vector.shape_cast %323 : vector<1x8x128xf32> to vector<8x128xf32>
    %325 = vector.shape_cast %321 : vector<8x128xf32> to vector<1x8x128xf32>
    tpu.vector_store %arg6[%322, %c0_116, %c0_117], %325 {strides = array<i32>} : memref<8x8x128xf32, #tpu.memory_space<vmem>>, vector<1x8x128xf32>,
    %c8_i32 = arith.constant 8 : i32
    %c0_118 = arith.constant 0 : index
    %c0_119 = arith.constant 0 : index
    %326 = vector.load %arg9[%c0_118, %c0_119] : memref<8x128xf32, #tpu.memory_space<vmem>>, vector<8x128xf32>
    tpu.vector_store %arg9[%c0_118, %c0_119], %321 {strides = array<i32>} : memref<8x128xf32, #tpu.memory_space<vmem>>, vector<8x128xf32>,
    %c0_120 = arith.constant 0 : index
    %c0_121 = arith.constant 0 : index
    %327 = vector.load %arg10[%c0_120, %c0_121] : memref<8x128xf32, #tpu.memory_space<vmem>>, vector<8x128xf32>
    tpu.vector_store %arg10[%c0_120, %c0_121], %319 {strides = array<i32>} : memref<8x128xf32, #tpu.memory_space<vmem>>, vector<8x128xf32>,
    %c0_i32_122 = arith.constant 0 : i32
    %328 = arith.cmpi eq, %arg1, %c0_i32_122 : i32
    %329 = arith.extui %328 : i1 to i32
    %c0_i32_123 = arith.constant 0 : i32
    %330 = arith.cmpi ne, %329, %c0_i32_123 : i32
    scf.if %330 {
      %c0_124 = arith.constant 0 : index
      %c0_125 = arith.constant 0 : index
      %331 = vector.load %arg7[%c0_124, %c0_125] : memref<8x128xf32, #tpu.memory_space<vmem>>, vector<8x128xf32>
      tpu.vector_store %arg7[%c0_124, %c0_125], %321 {strides = array<i32>} : memref<8x128xf32, #tpu.memory_space<vmem>>, vector<8x128xf32>,
      %c0_126 = arith.constant 0 : index
      %c0_127 = arith.constant 0 : index
      %332 = vector.load %arg8[%c0_126, %c0_127] : memref<8x128xf32, #tpu.memory_space<vmem>>, vector<8x128xf32>
      tpu.vector_store %arg8[%c0_126, %c0_127], %319 {strides = array<i32>} : memref<8x128xf32, #tpu.memory_space<vmem>>, vector<8x128xf32>,
    } else {
    }
    return
  }
  func.func @transform_0(%arg0: i32, %arg1: i32) -> (i32, i32, i32) {
    %c0_i32 = arith.constant 0 : i32
    %c0_i32_0 = arith.constant 0 : i32
    return %arg1, %arg0, %c0_i32 : i32, i32, i32
  }
  func.func @transform_1(%arg0: i32, %arg1: i32) -> (i32, i32) {
    %c0_i32 = arith.constant 0 : i32
    %c0_i32_0 = arith.constant 0 : i32
    %c0_i32_1 = arith.constant 0 : i32
    return %c0_i32, %c0_i32_0 : i32, i32
  }
  func.func @transform_2(%arg0: i32, %arg1: i32) -> (i32, i32) {
    %c0_i32 = arith.constant 0 : i32
    %c0_i32_0 = arith.constant 0 : i32
    return %arg0, %c0_i32 : i32, i32
  }
  func.func @transform_3(%arg0: i32, %arg1: i32) -> (i32, i32) {
    %c0_i32 = arith.constant 0 : i32
    %c0_i32_0 = arith.constant 0 : i32
    return %arg0, %c0_i32 : i32, i32
  }
  func.func @transform_4(%arg0: i32, %arg1: i32) -> (i32, i32, i32) {
    %c0_i32 = arith.constant 0 : i32
    %c0_i32_0 = arith.constant 0 : i32
    return %arg1, %arg0, %c0_i32 : i32, i32, i32
  }
  func.func @transform_5(%arg0: i32, %arg1: i32) -> (i32, i32) {
    %c0_i32 = arith.constant 0 : i32
    %c0_i32_0 = arith.constant 0 : i32
    return %arg0, %c0_i32 : i32, i32
  }
  func.func @transform_6(%arg0: i32, %arg1: i32) -> (i32, i32) {
    %c0_i32 = arith.constant 0 : i32
    %c0_i32_0 = arith.constant 0 : i32
    return %arg0, %c0_i32 : i32, i32
  }
}

</mosaic_0001>

<llo_original>
// kernel: tpu_custom_call.1
$region0: #{tpu_custom_call.1}
  #allocation0 [shape = 'u32[]', space=smem, size = 0x4, offset = 0x4, fixed_abs, tag = 'smem constant byte address 0x4 - core index']
  #allocation1 [shape = 'u32[144,128]{1,0:T(1,128)}', space=vmem, size = 0x12000, scoped, tag = 'internal scratch']
  #allocation2 [shape = 'f32[8,128]{1,0:T(8,128)}', space=vmem, size = 0x1000, scoped, tag = 'scratch operand']
  #allocation3 [shape = 'f32[8,128]{1,0:T(8,128)}', space=vmem, size = 0x1000, scoped, tag = 'scratch operand']
  %s0 = inlined_call_operand.hbm [shape: f32[8,8,512], index: 0, kind: input, shape index: {}]
  %s1 = inlined_call_operand.hbm [shape: f32[128,512], index: 1, kind: input, shape index: {}]
  %s2 = inlined_call_operand.hbm [shape: f32[8,128], index: 2, kind: input, shape index: {}]
  %s3 = inlined_call_operand.vmem [shape: f32[8,128], index: 3, kind: input, shape index: {}]
  %s4 = inlined_call_operand.hbm [shape: f32[8,8,128], index: 4, kind: output, shape index: {0}]
  %s5 = inlined_call_operand.hbm [shape: f32[8,128], index: 5, kind: output, shape index: {1}]
  %s6 = inlined_call_operand.hbm [shape: f32[8,128], index: 6, kind: output, shape index: {2}]
  %7 = xla_tuple %s4, %s5, %s6
  %s8 = sld [smem:[#allocation0]]
  $region62: #{tpu_custom_call.1} parent=0
    _
  %s10 = ssub.s32 1, %s8
  %s11 = scalar_select 0, %s10, %s8
  $region1: #{tpu_custom_call.1} parent=0
    #allocation4 [shape = 'u8[131072]{0}', space=vmem, size = 0x20000, scoped, tag = 'input window, operand 0, single buffered']
    #allocation5 [shape = 's32[1]{0}', space=sflag, size = 0x4, scoped, tag = 'scoped memory for tpu_custom_call.1']
    #allocation6 [shape = 's32[1]{0}', space=sflag, size = 0x4, scoped, tag = 'scoped memory for tpu_custom_call.1']
    #allocation7 [shape = 'u8[262144]{0}', space=vmem, size = 0x40000, scoped, tag = 'input window, operand 1, single buffered']
    #allocation8 [shape = 's32[1]{0}', space=sflag, size = 0x4, scoped, tag = 'scoped memory for tpu_custom_call.1']
    #allocation9 [shape = 'u8[4096]{0}', space=vmem, size = 0x1000, scoped, tag = 'input window, operand 2, single buffered']
    #allocation10 [shape = 'u8[32768]{0}', space=vmem, size = 0x8000, scoped, tag = 'output window, operand 0, single buffered']
    #allocation11 [shape = 'u8[4096]{0}', space=vmem, size = 0x1000, scoped, tag = 'output window, operand 1, single buffered']
    #allocation12 [shape = 's32[1]{0}', space=sflag, size = 0x4, scoped, tag = 'scoped memory for tpu_custom_call.1']
    #allocation13 [shape = 'u8[4096]{0}', space=vmem, size = 0x1000, scoped, tag = 'output window, operand 2, single buffered']
    %12 = vsyncpa [#allocation5], 0
    %13 = vsyncpa [#allocation8], 0
    %14 = vsyncpa [#allocation6], 0
    %15 = vsyncpa [#allocation12], 0
    // Predicated region
    $region2: #{tpu_custom_call.1} parent=1 // pred_check
      _
    $region3: #{tpu_custom_call.1} parent=1 // pred_check_branch
      %17 = sbr.rel (0) target = $region5
    $region4: #{tpu_custom_call.1} parent=1 // pred_region
      %s19 = ssub.s32 4096, 4096
      %20 = vsyncadd [#allocation5], %s19
      %s21 = sshll.u32 [#allocation4], 4
      %s22 = int_to_ptr.vmem [resolvable:$true] %s21
      %27 = dma.hbm_to_vmem [thread:$0]  %s0, 4096, %s22, [#allocation5], 512, 512, 32
    $region5: #{tpu_custom_call.1} parent=1 // pred_fallthru
      _
    // Predicated region
    $region6: #{tpu_custom_call.1} parent=1 // pred_check
      _
    $region7: #{tpu_custom_call.1} parent=1 // pred_check_branch
      %29 = sbr.rel (0) target = $region9
    $region8: #{tpu_custom_call.1} parent=1 // pred_region
      %s31 = ssub.s32 8192, 8192
      %32 = vsyncadd [#allocation8], %s31
      %s33 = sshll.u32 [#allocation7], 4
      %s34 = int_to_ptr.vmem [resolvable:$true] %s33
      %39 = dma.hbm_to_vmem [thread:$0]  %s1, 8192, %s34, [#allocation8], 512, 512, 32
    $region9: #{tpu_custom_call.1} parent=1 // pred_fallthru
      _
    // Predicated region
    $region10: #{tpu_custom_call.1} parent=1 // pred_check
      _
    $region11: #{tpu_custom_call.1} parent=1 // pred_check_branch
      %41 = sbr.rel (0) target = $region13
    $region12: #{tpu_custom_call.1} parent=1 // pred_region
      %s43 = ssub.s32 128, 128
      %44 = vsyncadd [#allocation8], %s43
      %s46 = sshll.u32 [#allocation9], 4
      %s47 = int_to_ptr.vmem [resolvable:$true] %s46
      %49 = dma.hbm_to_vmem [thread:$0]  %s2, 128, %s47, [#allocation8]
    $region13: #{tpu_custom_call.1} parent=1 // pred_fallthru
      _
    // Predicated region
    $region14: #{tpu_custom_call.1} parent=1 // pred_check
      _
    $region15: #{tpu_custom_call.1} parent=1 // pred_check_branch
      %51 = sbr.rel (0) target = $region17
    $region16: #{tpu_custom_call.1} parent=1 // pred_region
      _
    $region17: #{tpu_custom_call.1} parent=1 // pred_fallthru
      _
    // Predicated region
    $region18: #{tpu_custom_call.1} parent=1 // pred_check
      _
    $region19: #{tpu_custom_call.1} parent=1 // pred_check_branch
      %53 = sbr.rel (0) target = $region21
    $region20: #{tpu_custom_call.1} parent=1 // pred_region
      %54 = dma.done [#allocation5], 4096
    $region21: #{tpu_custom_call.1} parent=1 // pred_fallthru
      _
    // Predicated region
    $region22: #{tpu_custom_call.1} parent=1 // pred_check
      _
    $region23: #{tpu_custom_call.1} parent=1 // pred_check_branch
      %56 = sbr.rel (0) target = $region25
    $region24: #{tpu_custom_call.1} parent=1 // pred_region
      %57 = dma.done [#allocation8], 8192
    $region25: #{tpu_custom_call.1} parent=1 // pred_fallthru
      _
    // Predicated region
    $region26: #{tpu_custom_call.1} parent=1 // pred_check
      _
    $region27: #{tpu_custom_call.1} parent=1 // pred_check_branch
      %59 = sbr.rel (0) target = $region29
    $region28: #{tpu_custom_call.1} parent=1 // pred_region
      %60 = dma.done [#allocation8], 128
    $region29: #{tpu_custom_call.1} parent=1 // pred_fallthru
      _
    %p61 = scmp.eq.s32.totalorder 0, 0
    // Predicated region
    $region30: #{tpu_custom_call.1} parent=1 // pred_check
      %p62 = pneg %p61
    $region31: #{tpu_custom_call.1} parent=1 // pred_check_branch
      %64 = sbr.rel (%p62) target = $region33
    $region32: #{tpu_custom_call.1} parent=1 // pred_region
      %v65 = vld [vmem:[#allocation9] sm:$0xff]
      %66 = vst [vmem:[#allocation2] sm:$0xff] %v65
      %v67 = vld [vmem:[%s3] sm:$0xff]
      %68 = vst [vmem:[#allocation3] sm:$0xff] %v67
    $region33: #{tpu_custom_call.1} parent=1 // pred_fallthru
      _
    %v69 = vld [vmem:[#allocation7] sm:$0xff]
    %v70 = vld [vmem:[#allocation7 + $0x8] sm:$0xff]
    %v71 = vld [vmem:[#allocation7 + $0x10] sm:$0xff]
    %v72 = vld [vmem:[#allocation7 + $0x18] sm:$0xff]
    %v73 = vld [vmem:[#allocation7 + $0x20] sm:$0xff]
    %v74 = vld [vmem:[#allocation7 + $0x28] sm:$0xff]
    %v75 = vld [vmem:[#allocation7 + $0x30] sm:$0xff]
    %v76 = vld [vmem:[#allocation7 + $0x38] sm:$0xff]
    %v77 = vld [vmem:[#allocation7 + $0x40] sm:$0xff]
    %v78 = vld [vmem:[#allocation7 + $0x48] sm:$0xff]
    %v79 = vld [vmem:[#allocation7 + $0x50] sm:$0xff]
    %v80 = vld [vmem:[#allocation7 + $0x58] sm:$0xff]
    %v81 = vld [vmem:[#allocation7 + $0x60] sm:$0xff]
    %v82 = vld [vmem:[#allocation7 + $0x68] sm:$0xff]
    %v83 = vld [vmem:[#allocation7 + $0x70] sm:$0xff]
    %v84 = vld [vmem:[#allocation7 + $0x78] sm:$0xff]
    %v85 = vld [vmem:[#allocation7 + $0x80] sm:$0xff]
    %v86 = vld [vmem:[#allocation7 + $0x88] sm:$0xff]
    %v87 = vld [vmem:[#allocation7 + $0x90] sm:$0xff]
    %v88 = vld [vmem:[#allocation7 + $0x98] sm:$0xff]
    %v89 = vld [vmem:[#allocation7 + $0xa0] sm:$0xff]
    %v90 = vld [vmem:[#allocation7 + $0xa8] sm:$0xff]
    %v91 = vld [vmem:[#allocation7 + $0xb0] sm:$0xff]
    %v92 = vld [vmem:[#allocation7 + $0xb8] sm:$0xff]
    %v93 = vld [vmem:[#allocation7 + $0xc0] sm:$0xff]
    %v94 = vld [vmem:[#allocation7 + $0xc8] sm:$0xff]
    %v95 = vld [vmem:[#allocation7 + $0xd0] sm:$0xff]
    %v96 = vld [vmem:[#allocation7 + $0xd8] sm:$0xff]
    %v97 = vld [vmem:[#allocation7 + $0xe0] sm:$0xff]
    %v98 = vld [vmem:[#allocation7 + $0xe8] sm:$0xff]
    %v99 = vld [vmem:[#allocation7 + $0xf0] sm:$0xff]
    %v100 = vld [vmem:[#allocation7 + $0xf8] sm:$0xff]
    %v101 = vld [vmem:[#allocation7 + $0x100] sm:$0xff]
    %v102 = vld [vmem:[#allocation7 + $0x108] sm:$0xff]
    %v103 = vld [vmem:[#allocation7 + $0x110] sm:$0xff]
    %v104 = vld [vmem:[#allocation7 + $0x118] sm:$0xff]
    %v105 = vld [vmem:[#allocation7 + $0x120] sm:$0xff]
    %v106 = vld [vmem:[#allocation7 + $0x128] sm:$0xff]
    %v107 = vld [vmem:[#allocation7 + $0x130] sm:$0xff]
    %v108 = vld [vmem:[#allocation7 + $0x138] sm:$0xff]
    %v109 = vld [vmem:[#allocation7 + $0x140] sm:$0xff]
    %v110 = vld [vmem:[#allocation7 + $0x148] sm:$0xff]
    %v111 = vld [vmem:[#allocation7 + $0x150] sm:$0xff]
    %v112 = vld [vmem:[#allocation7 + $0x158] sm:$0xff]
    %v113 = vld [vmem:[#allocation7 + $0x160] sm:$0xff]
    %v114 = vld [vmem:[#allocation7 + $0x168] sm:$0xff]
    %v115 = vld [vmem:[#allocation7 + $0x170] sm:$0xff]
    %v116 = vld [vmem:[#allocation7 + $0x178] sm:$0xff]
    %v117 = vld [vmem:[#allocation7 + $0x180] sm:$0xff]
    %v118 = vld [vmem:[#allocation7 + $0x188] sm:$0xff]
    %v119 = vld [vmem:[#allocation7 + $0x190] sm:$0xff]
    %v120 = vld [vmem:[#allocation7 + $0x198] sm:$0xff]
    %v121 = vld [vmem:[#allocation7 + $0x1a0] sm:$0xff]
    %v122 = vld [vmem:[#allocation7 + $0x1a8] sm:$0xff]
    %v123 = vld [vmem:[#allocation7 + $0x1b0] sm:$0xff]
    %v124 = vld [vmem:[#allocation7 + $0x1b8] sm:$0xff]
    %v125 = vld [vmem:[#allocation7 + $0x1c0] sm:$0xff]
    %v126 = vld [vmem:[#allocation7 + $0x1c8] sm:$0xff]
    %v127 = vld [vmem:[#allocation7 + $0x1d0] sm:$0xff]
    %v128 = vld [vmem:[#allocation7 + $0x1d8] sm:$0xff]
    %v129 = vld [vmem:[#allocation7 + $0x1e0] sm:$0xff]
    %v130 = vld [vmem:[#allocation7 + $0x1e8] sm:$0xff]
    %v131 = vld [vmem:[#allocation7 + $0x1f0] sm:$0xff]
    %v132 = vld [vmem:[#allocation7 + $0x1f8] sm:$0xff]
    %v133 = vld [vmem:[#allocation2] sm:$0xff]
    %v134 = vld [vmem:[#allocation3] sm:$0xff]
    %v135 = vld [vmem:[#allocation4] sm:$0xff]
    %v136 = vld [vmem:[#allocation4 + $0x8] sm:$0xff]
    %v137 = vld [vmem:[#allocation4 + $0x10] sm:$0xff]
    %v138 = vld [vmem:[#allocation4 + $0x18] sm:$0xff]
    %139 = vmatprep.subr.mxu0 %v70
    %140 = vmatpush1.msra.mxu0 %v69
    %141 = vmatprep.subr.mxu0 %v74
    %142 = vmatpush1.msra.mxu0 %v73
    %143 = vmatprep.subr.mxu0 %v78
    %144 = vmatpush1.msra.mxu0 %v77
    %145 = vmatprep.subr.mxu0 %v82
    %146 = vmatpush1.msra.mxu0 %v81
    %147 = vmatprep.subr.mxu0 %v86
    %148 = vmatpush1.msra.mxu0 %v85
    %149 = vmatprep.subr.mxu0 %v90
    %150 = vmatpush1.msra.mxu0 %v89
    %151 = vmatprep.subr.mxu0 %v94
    %152 = vmatpush1.msra.mxu0 %v93
    %153 = vmatprep.subr.mxu0 %v98
    %154 = vmatpush1.msra.mxu0 %v97
    %155 = vmatprep.subr.mxu0 %v102
    %156 = vmatpush1.msra.mxu0 %v101
    %157 = vmatprep.subr.mxu0 %v106
    %158 = vmatpush1.msra.mxu0 %v105
    %159 = vmatprep.subr.mxu0 %v110
    %160 = vmatpush1.msra.mxu0 %v109
    %161 = vmatprep.subr.mxu0 %v114
    %162 = vmatpush1.msra.mxu0 %v113
    %163 = vmatprep.subr.mxu0 %v118
    %164 = vmatpush1.msra.mxu0 %v117
    %165 = vmatprep.subr.mxu0 %v122
    %166 = vmatpush1.msra.mxu0 %v121
    %167 = vmatprep.subr.mxu0 %v126
    %168 = vmatpush1.msra.mxu0 %v125
    %169 = vmatprep.subr.mxu0 %v130
    %170 = vmatpush1.msra.mxu0 %v129
    %171 = vmatprep.subr.mxu0 0.0
    %172 = vmatpush1.msra.mxu0 0.0
    %173 = vmatprep.subr.mxu0 0.0
    %174 = vmatpush1.msra.mxu0 0.0
    %175 = vmatprep.subr.mxu0 0.0
    %176 = vmatpush1.msra.mxu0 0.0
    %177 = vmatprep.subr.mxu0 0.0
    %178 = vmatpush1.msra.mxu0 0.0
    %179 = vmatprep.subr.mxu0 0.0
    %180 = vmatpush1.msra.mxu0 0.0
    %181 = vmatprep.subr.mxu0 0.0
    %182 = vmatpush1.msra.mxu0 0.0
    %183 = vmatprep.subr.mxu0 0.0
    %184 = vmatpush1.msra.mxu0 0.0
    %185 = vmatprep.subr.mxu0 0.0
    %186 = vmatpush1.msra.mxu0 0.0
    %187 = vmatprep.subr.mxu0 0.0
    %188 = vmatpush1.msra.mxu0 0.0
    %189 = vmatprep.subr.mxu0 0.0
    %190 = vmatpush1.msra.mxu0 0.0
    %191 = vmatprep.subr.mxu0 0.0
    %192 = vmatpush1.msra.mxu0 0.0
    %193 = vmatprep.subr.mxu0 0.0
    %194 = vmatpush1.msra.mxu0 0.0
    %195 = vmatprep.subr.mxu0 0.0
    %196 = vmatpush1.msra.mxu0 0.0
    %197 = vmatprep.subr.mxu0 0.0
    %198 = vmatpush1.msra.mxu0 0.0
    %199 = vmatprep.subr.mxu0 0.0
    %200 = vmatpush1.msra.mxu0 0.0
    %201 = vmatprep.subr.mxu0 0.0
    %202 = vmatpush1.msra.mxu0 0.0
    %203 = vmatprep.mubr.f32.mxu0 0.0
    %204 = vmatmul.mubr.f32.gmra.mrb[0].mxu0 %v133
    %v205 = vpop.f32.mrb[0].mxu0
    %v206 = vadd.f32 0.0, %v205
    %v207 = vpop.f32.mrb[0].mxu0
    %v208 = vadd.f32 0.0, %v207
    %209 = vdwg.mxu0
    %210 = vmatprep.subr.mxu0 %v72
    %211 = vmatpush1.msra.mxu0 %v71
    %212 = vmatprep.subr.mxu0 %v76
    %213 = vmatpush1.msra.mxu0 %v75
    %214 = vmatprep.subr.mxu0 %v80
    %215 = vmatpush1.msra.mxu0 %v79
    %216 = vmatprep.subr.mxu0 %v84
    %217 = vmatpush1.msra.mxu0 %v83
    %218 = vmatprep.subr.mxu0 %v88
    %219 = vmatpush1.msra.mxu0 %v87
    %220 = vmatprep.subr.mxu0 %v92
    %221 = vmatpush1.msra.mxu0 %v91
    %222 = vmatprep.subr.mxu0 %v96
    %223 = vmatpush1.msra.mxu0 %v95
    %224 = vmatprep.subr.mxu0 %v100
    %225 = vmatpush1.msra.mxu0 %v99
    %226 = vmatprep.subr.mxu0 %v104
    %227 = vmatpush1.msra.mxu0 %v103
    %228 = vmatprep.subr.mxu0 %v108
    %229 = vmatpush1.msra.mxu0 %v107
    %230 = vmatprep.subr.mxu0 %v112
    %231 = vmatpush1.msra.mxu0 %v111
    %232 = vmatprep.subr.mxu0 %v116
    %233 = vmatpush1.msra.mxu0 %v115
    %234 = vmatprep.subr.mxu0 %v120
    %235 = vmatpush1.msra.mxu0 %v119
    %236 = vmatprep.subr.mxu0 %v124
    %237 = vmatpush1.msra.mxu0 %v123
    %238 = vmatprep.subr.mxu0 %v128
    %239 = vmatpush1.msra.mxu0 %v127
    %240 = vmatprep.subr.mxu0 %v132
    %241 = vmatpush1.msra.mxu0 %v131
    %242 = vmatprep.subr.mxu0 0.0
    %243 = vmatpush1.msra.mxu0 0.0
    %244 = vmatprep.subr.mxu0 0.0
    %245 = vmatpush1.msra.mxu0 0.0
    %246 = vmatprep.subr.mxu0 0.0
    %247 = vmatpush1.msra.mxu0 0.0
    %248 = vmatprep.subr.mxu0 0.0
    %249 = vmatpush1.msra.mxu0 0.0
    %250 = vmatprep.subr.mxu0 0.0
    %251 = vmatpush1.msra.mxu0 0.0
    %252 = vmatprep.subr.mxu0 0.0
    %253 = vmatpush1.msra.mxu0 0.0
    %254 = vmatprep.subr.mxu0 0.0
    %255 = vmatpush1.msra.mxu0 0.0
    %256 = vmatprep.subr.mxu0 0.0
    %257 = vmatpush1.msra.mxu0 0.0
    %258 = vmatprep.subr.mxu0 0.0
    %259 = vmatpush1.msra.mxu0 0.0
    %260 = vmatprep.subr.mxu0 0.0
    %261 = vmatpush1.msra.mxu0 0.0
    %262 = vmatprep.subr.mxu0 0.0
    %263 = vmatpush1.msra.mxu0 0.0
    %264 = vmatprep.subr.mxu0 0.0
    %265 = vmatpush1.msra.mxu0 0.0
    %266 = vmatprep.subr.mxu0 0.0
    %267 = vmatpush1.msra.mxu0 0.0
    %268 = vmatprep.subr.mxu0 0.0
    %269 = vmatpush1.msra.mxu0 0.0
    %270 = vmatprep.subr.mxu0 0.0
    %271 = vmatpush1.msra.mxu0 0.0
    %272 = vmatprep.subr.mxu0 0.0
    %273 = vmatpush1.msra.mxu0 0.0
    %274 = vmatprep.mubr.f32.mxu0 0.0
    %275 = vmatmul.mubr.f32.gmra.mrb[0].mxu0 %v133
    %v276 = vpop.f32.mrb[0].mxu0
    %v277 = vadd.f32 0.0, %v276
    %v278 = vpop.f32.mrb[0].mxu0
    %v279 = vadd.f32 0.0, %v278
    %280 = vdwg.mxu0
    %v281 = vadd.f32 %v135, %v206
    %v282 = vadd.f32 %v136, %v208
    %v283 = vadd.f32 %v137, %v277
    %v284 = vadd.f32 %v138, %v279
    %v285 = vmul.f32 %v281, 0.5
    %v286 = vtanh.pop %v285
    %v287 = vadd.f32 %v286, 1.0
    %v288 = vmul.f32 %v287, 0.5
    %v289 = vmul.f32 %v282, 0.5
    %v290 = vtanh.pop %v289
    %v291 = vadd.f32 %v290, 1.0
    %v292 = vmul.f32 %v291, 0.5
    %v293 = vtanh.pop %v283
    %v294 = vmul.f32 %v284, 0.5
    %v295 = vtanh.pop %v294
    %v296 = vadd.f32 %v295, 1.0
    %v297 = vmul.f32 %v296, 0.5
    %v298 = vmul.f32 %v292, %v134
    %v299 = vmul.f32 %v288, %v293
    %v300 = vadd.f32 %v298, %v299
    %v301 = vtanh.pop %v300
    %v302 = vmul.f32 %v297, %v301
    %303 = vst [vmem:[#allocation10] sm:$0xff] %v302
    %s304 = scalar_lea.vmem [#allocation4], 32
    %v305 = vld [vmem:[%s304] sm:$0xff]
    %v306 = vld [vmem:[%s304 + $0x8] sm:$0xff]
    %v307 = vld [vmem:[%s304 + $0x10] sm:$0xff]
    %v308 = vld [vmem:[%s304 + $0x18] sm:$0xff]
    %309 = vmatprep.subr.mxu0 %v70
    %310 = vmatpush1.msra.mxu0 %v69
    %311 = vmatprep.subr.mxu0 %v74
    %312 = vmatpush1.msra.mxu0 %v73
    %313 = vmatprep.subr.mxu0 %v78
    %314 = vmatpush1.msra.mxu0 %v77
    %315 = vmatprep.subr.mxu0 %v82
    %316 = vmatpush1.msra.mxu0 %v81
    %317 = vmatprep.subr.mxu0 %v86
    %318 = vmatpush1.msra.mxu0 %v85
    %319 = vmatprep.subr.mxu0 %v90
    %320 = vmatpush1.msra.mxu0 %v89
    %321 = vmatprep.subr.mxu0 %v94
    %322 = vmatpush1.msra.mxu0 %v93
    %323 = vmatprep.subr.mxu0 %v98
    %324 = vmatpush1.msra.mxu0 %v97
    %325 = vmatprep.subr.mxu0 %v102
    %326 = vmatpush1.msra.mxu0 %v101
    %327 = vmatprep.subr.mxu0 %v106
    %328 = vmatpush1.msra.mxu0 %v105
    %329 = vmatprep.subr.mxu0 %v110
    %330 = vmatpush1.msra.mxu0 %v109
    %331 = vmatprep.subr.mxu0 %v114
    %332 = vmatpush1.msra.mxu0 %v113
    %333 = vmatprep.subr.mxu0 %v118
    %334 = vmatpush1.msra.mxu0 %v117
    %335 = vmatprep.subr.mxu0 %v122
    %336 = vmatpush1.msra.mxu0 %v121
    %337 = vmatprep.subr.mxu0 %v126
    %338 = vmatpush1.msra.mxu0 %v125
    %339 = vmatprep.subr.mxu0 %v130
    %340 = vmatpush1.msra.mxu0 %v129
    %341 = vmatprep.subr.mxu0 0.0
    %342 = vmatpush1.msra.mxu0 0.0
    %343 = vmatprep.subr.mxu0 0.0
    %344 = vmatpush1.msra.mxu0 0.0
    %345 = vmatprep.subr.mxu0 0.0
    %346 = vmatpush1.msra.mxu0 0.0
    %347 = vmatprep.subr.mxu0 0.0
    %348 = vmatpush1.msra.mxu0 0.0
    %349 = vmatprep.subr.mxu0 0.0
    %350 = vmatpush1.msra.mxu0 0.0
    %351 = vmatprep.subr.mxu0 0.0
    %352 = vmatpush1.msra.mxu0 0.0
    %353 = vmatprep.subr.mxu0 0.0
    %354 = vmatpush1.msra.mxu0 0.0
    %355 = vmatprep.subr.mxu0 0.0
    %356 = vmatpush1.msra.mxu0 0.0
    %357 = vmatprep.subr.mxu0 0.0
    %358 = vmatpush1.msra.mxu0 0.0
    %359 = vmatprep.subr.mxu0 0.0
    %360 = vmatpush1.msra.mxu0 0.0
    %361 = vmatprep.subr.mxu0 0.0
    %362 = vmatpush1.msra.mxu0 0.0
    %363 = vmatprep.subr.mxu0 0.0
    %364 = vmatpush1.msra.mxu0 0.0
    %365 = vmatprep.subr.mxu0 0.0
    %366 = vmatpush1.msra.mxu0 0.0
    %367 = vmatprep.subr.mxu0 0.0
    %368 = vmatpush1.msra.mxu0 0.0
    %369 = vmatprep.subr.mxu0 0.0
    %370 = vmatpush1.msra.mxu0 0.0
    %371 = vmatprep.subr.mxu0 0.0
    %372 = vmatpush1.msra.mxu0 0.0
    %373 = vmatprep.mubr.f32.mxu0 0.0
    %374 = vmatmul.mubr.f32.gmra.mrb[0].mxu0 %v302
    %v375 = vpop.f32.mrb[0].mxu0
    %v376 = vadd.f32 0.0, %v375
    %v377 = vpop.f32.mrb[0].mxu0
    %v378 = vadd.f32 0.0, %v377
    %379 = vdwg.mxu0
    %380 = vmatprep.subr.mxu0 %v72
    %381 = vmatpush1.msra.mxu0 %v71
    %382 = vmatprep.subr.mxu0 %v76
    %383 = vmatpush1.msra.mxu0 %v75
    %384 = vmatprep.subr.mxu0 %v80
    %385 = vmatpush1.msra.mxu0 %v79
    %386 = vmatprep.subr.mxu0 %v84
    %387 = vmatpush1.msra.mxu0 %v83
    %388 = vmatprep.subr.mxu0 %v88
    %389 = vmatpush1.msra.mxu0 %v87
    %390 = vmatprep.subr.mxu0 %v92
    %391 = vmatpush1.msra.mxu0 %v91
    %392 = vmatprep.subr.mxu0 %v96
    %393 = vmatpush1.msra.mxu0 %v95
    %394 = vmatprep.subr.mxu0 %v100
    %395 = vmatpush1.msra.mxu0 %v99
    %396 = vmatprep.subr.mxu0 %v104
    %397 = vmatpush1.msra.mxu0 %v103
    %398 = vmatprep.subr.mxu0 %v108
    %399 = vmatpush1.msra.mxu0 %v107
    %400 = vmatprep.subr.mxu0 %v112
    %401 = vmatpush1.msra.mxu0 %v111
    %402 = vmatprep.subr.mxu0 %v116
    %403 = vmatpush1.msra.mxu0 %v115
    %404 = vmatprep.subr.mxu0 %v120
    %405 = vmatpush1.msra.mxu0 %v119
    %406 = vmatprep.subr.mxu0 %v124
    %407 = vmatpush1.msra.mxu0 %v123
    %408 = vmatprep.subr.mxu0 %v128
    %409 = vmatpush1.msra.mxu0 %v127
    %410 = vmatprep.subr.mxu0 %v132
    %411 = vmatpush1.msra.mxu0 %v131
    %412 = vmatprep.subr.mxu0 0.0
    %413 = vmatpush1.msra.mxu0 0.0
    %414 = vmatprep.subr.mxu0 0.0
    %415 = vmatpush1.msra.mxu0 0.0
    %416 = vmatprep.subr.mxu0 0.0
    %417 = vmatpush1.msra.mxu0 0.0
    %418 = vmatprep.subr.mxu0 0.0
    %419 = vmatpush1.msra.mxu0 0.0
    %420 = vmatprep.subr.mxu0 0.0
    %421 = vmatpush1.msra.mxu0 0.0
    %422 = vmatprep.subr.mxu0 0.0
    %423 = vmatpush1.msra.mxu0 0.0
    %424 = vmatprep.subr.mxu0 0.0
    %425 = vmatpush1.msra.mxu0 0.0
    %426 = vmatprep.subr.mxu0 0.0
    %427 = vmatpush1.msra.mxu0 0.0
    %428 = vmatprep.subr.mxu0 0.0
    %429 = vmatpush1.msra.mxu0 0.0
    %430 = vmatprep.subr.mxu0 0.0
    %431 = vmatpush1.msra.mxu0 0.0
    %432 = vmatprep.subr.mxu0 0.0
    %433 = vmatpush1.msra.mxu0 0.0
    %434 = vmatprep.subr.mxu0 0.0
    %435 = vmatpush1.msra.mxu0 0.0
    %436 = vmatprep.subr.mxu0 0.0
    %437 = vmatpush1.msra.mxu0 0.0
    %438 = vmatprep.subr.mxu0 0.0
    %439 = vmatpush1.msra.mxu0 0.0
    %440 = vmatprep.subr.mxu0 0.0
    %441 = vmatpush1.msra.mxu0 0.0
    %442 = vmatprep.subr.mxu0 0.0
    %443 = vmatpush1.msra.mxu0 0.0
    %444 = vmatprep.mubr.f32.mxu0 0.0
    %445 = vmatmul.mubr.f32.gmra.mrb[0].mxu0 %v302
    %v446 = vpop.f32.mrb[0].mxu0
    %v447 = vadd.f32 0.0, %v446
    %v448 = vpop.f32.mrb[0].mxu0
    %v449 = vadd.f32 0.0, %v448
    %450 = vdwg.mxu0
    %v451 = vadd.f32 %v305, %v376
    %v452 = vadd.f32 %v306, %v378
    %v453 = vadd.f32 %v307, %v447
    %v454 = vadd.f32 %v308, %v449
    %v455 = vmul.f32 %v451, 0.5
    %v456 = vtanh.pop %v455
    %v457 = vadd.f32 %v456, 1.0
    %v458 = vmul.f32 %v457, 0.5
    %v459 = vmul.f32 %v452, 0.5
    %v460 = vtanh.pop %v459
    %v461 = vadd.f32 %v460, 1.0
    %v462 = vmul.f32 %v461, 0.5
    %v463 = vtanh.pop %v453
    %v464 = vmul.f32 %v454, 0.5
    %v465 = vtanh.pop %v464
    %v466 = vadd.f32 %v465, 1.0
    %v467 = vmul.f32 %v466, 0.5
    %v468 = vmul.f32 %v462, %v300
    %v469 = vmul.f32 %v458, %v463
    %v470 = vadd.f32 %v468, %v469
    %v471 = vtanh.pop %v470
    %v472 = vmul.f32 %v467, %v471
    %s473 = scalar_lea.vmem [#allocation10], 8
    %474 = vst [vmem:[%s473] sm:$0xff] %v472
    %s475 = scalar_lea.vmem [#allocation4], 64
    %v476 = vld [vmem:[%s475] sm:$0xff]
    %v477 = vld [vmem:[%s475 + $0x8] sm:$0xff]
    %v478 = vld [vmem:[%s475 + $0x10] sm:$0xff]
    %v479 = vld [vmem:[%s475 + $0x18] sm:$0xff]
    %480 = vmatprep.subr.mxu0 %v70
    %481 = vmatpush1.msra.mxu0 %v69
    %482 = vmatprep.subr.mxu0 %v74
    %483 = vmatpush1.msra.mxu0 %v73
    %484 = vmatprep.subr.mxu0 %v78
    %485 = vmatpush1.msra.mxu0 %v77
    %486 = vmatprep.subr.mxu0 %v82
    %487 = vmatpush1.msra.mxu0 %v81
    %488 = vmatprep.subr.mxu0 %v86
    %489 = vmatpush1.msra.mxu0 %v85
    %490 = vmatprep.subr.mxu0 %v90
    %491 = vmatpush1.msra.mxu0 %v89
    %492 = vmatprep.subr.mxu0 %v94
    %493 = vmatpush1.msra.mxu0 %v93
    %494 = vmatprep.subr.mxu0 %v98
    %495 = vmatpush1.msra.mxu0 %v97
    %496 = vmatprep.subr.mxu0 %v102
    %497 = vmatpush1.msra.mxu0 %v101
    %498 = vmatprep.subr.mxu0 %v106
    %499 = vmatpush1.msra.mxu0 %v105
    %500 = vmatprep.subr.mxu0 %v110
    %501 = vmatpush1.msra.mxu0 %v109
    %502 = vmatprep.subr.mxu0 %v114
    %503 = vmatpush1.msra.mxu0 %v113
    %504 = vmatprep.subr.mxu0 %v118
    %505 = vmatpush1.msra.mxu0 %v117
    %506 = vmatprep.subr.mxu0 %v122
    %507 = vmatpush1.msra.mxu0 %v121
    %508 = vmatprep.subr.mxu0 %v126
    %509 = vmatpush1.msra.mxu0 %v125
    %510 = vmatprep.subr.mxu0 %v130
    %511 = vmatpush1.msra.mxu0 %v129
    %512 = vmatprep.subr.mxu0 0.0
    %513 = vmatpush1.msra.mxu0 0.0
    %514 = vmatprep.subr.mxu0 0.0
    %515 = vmatpush1.msra.mxu0 0.0
    %516 = vmatprep.subr.mxu0 0.0
    %517 = vmatpush1.msra.mxu0 0.0
    %518 = vmatprep.subr.mxu0 0.0
    %519 = vmatpush1.msra.mxu0 0.0
    %520 = vmatprep.subr.mxu0 0.0
    %521 = vmatpush1.msra.mxu0 0.0
    %522 = vmatprep.subr.mxu0 0.0
    %523 = vmatpush1.msra.mxu0 0.0
    %524 = vmatprep.subr.mxu0 0.0
    %525 = vmatpush1.msra.mxu0 0.0
    %526 = vmatprep.subr.mxu0 0.0
    %527 = vmatpush1.msra.mxu0 0.0
    %528 = vmatprep.subr.mxu0 0.0
    %529 = vmatpush1.msra.mxu0 0.0
    %530 = vmatprep.subr.mxu0 0.0
    %531 = vmatpush1.msra.mxu0 0.0
    %532 = vmatprep.subr.mxu0 0.0
    %533 = vmatpush1.msra.mxu0 0.0
    %534 = vmatprep.subr.mxu0 0.0
    %535 = vmatpush1.msra.mxu0 0.0
    %536 = vmatprep.subr.mxu0 0.0
    %537 = vmatpush1.msra.mxu0 0.0
    %538 = vmatprep.subr.mxu0 0.0
    %539 = vmatpush1.msra.mxu0 0.0
    %540 = vmatprep.subr.mxu0 0.0
    %541 = vmatpush1.msra.mxu0 0.0
    %542 = vmatprep.subr.mxu0 0.0
    %543 = vmatpush1.msra.mxu0 0.0
    %544 = vmatprep.mubr.f32.mxu0 0.0
    %545 = vmatmul.mubr.f32.gmra.mrb[0].mxu0 %v472
    %v546 = vpop.f32.mrb[0].mxu0
    %v547 = vadd.f32 0.0, %v546
    %v548 = vpop.f32.mrb[0].mxu0
    %v549 = vadd.f32 0.0, %v548
    %550 = vdwg.mxu0
    %551 = vmatprep.subr.mxu0 %v72
    %552 = vmatpush1.msra.mxu0 %v71
    %553 = vmatprep.subr.mxu0 %v76
    %554 = vmatpush1.msra.mxu0 %v75
    %555 = vmatprep.subr.mxu0 %v80
    %556 = vmatpush1.msra.mxu0 %v79
    %557 = vmatprep.subr.mxu0 %v84
    %558 = vmatpush1.msra.mxu0 %v83
    %559 = vmatprep.subr.mxu0 %v88
    %560 = vmatpush1.msra.mxu0 %v87
    %561 = vmatprep.subr.mxu0 %v92
    %562 = vmatpush1.msra.mxu0 %v91
    %563 = vmatprep.subr.mxu0 %v96
    %564 = vmatpush1.msra.mxu0 %v95
    %565 = vmatprep.subr.mxu0 %v100
    %566 = vmatpush1.msra.mxu0 %v99
    %567 = vmatprep.subr.mxu0 %v104
    %568 = vmatpush1.msra.mxu0 %v103
    %569 = vmatprep.subr.mxu0 %v108
    %570 = vmatpush1.msra.mxu0 %v107
    %571 = vmatprep.subr.mxu0 %v112
    %572 = vmatpush1.msra.mxu0 %v111
    %573 = vmatprep.subr.mxu0 %v116
    %574 = vmatpush1.msra.mxu0 %v115
    %575 = vmatprep.subr.mxu0 %v120
    %576 = vmatpush1.msra.mxu0 %v119
    %577 = vmatprep.subr.mxu0 %v124
    %578 = vmatpush1.msra.mxu0 %v123
    %579 = vmatprep.subr.mxu0 %v128
    %580 = vmatpush1.msra.mxu0 %v127
    %581 = vmatprep.subr.mxu0 %v132
    %582 = vmatpush1.msra.mxu0 %v131
    %583 = vmatprep.subr.mxu0 0.0
    %584 = vmatpush1.msra.mxu0 0.0
    %585 = vmatprep.subr.mxu0 0.0
    %586 = vmatpush1.msra.mxu0 0.0
    %587 = vmatprep.subr.mxu0 0.0
    %588 = vmatpush1.msra.mxu0 0.0
    %589 = vmatprep.subr.mxu0 0.0
    %590 = vmatpush1.msra.mxu0 0.0
    %591 = vmatprep.subr.mxu0 0.0
    %592 = vmatpush1.msra.mxu0 0.0
    %593 = vmatprep.subr.mxu0 0.0
    %594 = vmatpush1.msra.mxu0 0.0
    %595 = vmatprep.subr.mxu0 0.0
    %596 = vmatpush1.msra.mxu0 0.0
    %597 = vmatprep.subr.mxu0 0.0
    %598 = vmatpush1.msra.mxu0 0.0
    %599 = vmatprep.subr.mxu0 0.0
    %600 = vmatpush1.msra.mxu0 0.0
    %601 = vmatprep.subr.mxu0 0.0
    %602 = vmatpush1.msra.mxu0 0.0
    %603 = vmatprep.subr.mxu0 0.0
    %604 = vmatpush1.msra.mxu0 0.0
    %605 = vmatprep.subr.mxu0 0.0
    %606 = vmatpush1.msra.mxu0 0.0
    %607 = vmatprep.subr.mxu0 0.0
    %608 = vmatpush1.msra.mxu0 0.0
    %609 = vmatprep.subr.mxu0 0.0
    %610 = vmatpush1.msra.mxu0 0.0
    %611 = vmatprep.subr.mxu0 0.0
    %612 = vmatpush1.msra.mxu0 0.0
    %613 = vmatprep.subr.mxu0 0.0
    %614 = vmatpush1.msra.mxu0 0.0
    %615 = vmatprep.mubr.f32.mxu0 0.0
    %616 = vmatmul.mubr.f32.gmra.mrb[0].mxu0 %v472
    %v617 = vpop.f32.mrb[0].mxu0
    %v618 = vadd.f32 0.0, %v617
    %v619 = vpop.f32.mrb[0].mxu0
    %v620 = vadd.f32 0.0, %v619
    %621 = vdwg.mxu0
    %v622 = vadd.f32 %v476, %v547
    %v623 = vadd.f32 %v477, %v549
    %v624 = vadd.f32 %v478, %v618
    %v625 = vadd.f32 %v479, %v620
    %v626 = vmul.f32 %v622, 0.5
    %v627 = vtanh.pop %v626
    %v628 = vadd.f32 %v627, 1.0
    %v629 = vmul.f32 %v628, 0.5
    %v630 = vmul.f32 %v623, 0.5
    %v631 = vtanh.pop %v630
    %v632 = vadd.f32 %v631, 1.0
    %v633 = vmul.f32 %v632, 0.5
    %v634 = vtanh.pop %v624
    %v635 = vmul.f32 %v625, 0.5
    %v636 = vtanh.pop %v635
    %v637 = vadd.f32 %v636, 1.0
    %v638 = vmul.f32 %v637, 0.5
    %v639 = vmul.f32 %v633, %v470
    %v640 = vmul.f32 %v629, %v634
    %v641 = vadd.f32 %v639, %v640
    %v642 = vtanh.pop %v641
    %v643 = vmul.f32 %v638, %v642
    %s644 = scalar_lea.vmem [#allocation10], 16
    %645 = vst [vmem:[%s644] sm:$0xff] %v643
    %s646 = scalar_lea.vmem [#allocation4], 96
    %v647 = vld [vmem:[%s646] sm:$0xff]
    %v648 = vld [vmem:[%s646 + $0x8] sm:$0xff]
    %v649 = vld [vmem:[%s646 + $0x10] sm:$0xff]
    %v650 = vld [vmem:[%s646 + $0x18] sm:$0xff]
    %651 = vmatprep.subr.mxu0 %v70
    %652 = vmatpush1.msra.mxu0 %v69
    %653 = vmatprep.subr.mxu0 %v74
    %654 = vmatpush1.msra.mxu0 %v73
    %655 = vmatprep.subr.mxu0 %v78
    %656 = vmatpush1.msra.mxu0 %v77
    %657 = vmatprep.subr.mxu0 %v82
    %658 = vmatpush1.msra.mxu0 %v81
    %659 = vmatprep.subr.mxu0 %v86
    %660 = vmatpush1.msra.mxu0 %v85
    %661 = vmatprep.subr.mxu0 %v90
    %662 = vmatpush1.msra.mxu0 %v89
    %663 = vmatprep.subr.mxu0 %v94
    %664 = vmatpush1.msra.mxu0 %v93
    %665 = vmatprep.subr.mxu0 %v98
    %666 = vmatpush1.msra.mxu0 %v97
    %667 = vmatprep.subr.mxu0 %v102
    %668 = vmatpush1.msra.mxu0 %v101
    %669 = vmatprep.subr.mxu0 %v106
    %670 = vmatpush1.msra.mxu0 %v105
    %671 = vmatprep.subr.mxu0 %v110
    %672 = vmatpush1.msra.mxu0 %v109
    %673 = vmatprep.subr.mxu0 %v114
    %674 = vmatpush1.msra.mxu0 %v113
    %675 = vmatprep.subr.mxu0 %v118
    %676 = vmatpush1.msra.mxu0 %v117
    %677 = vmatprep.subr.mxu0 %v122
    %678 = vmatpush1.msra.mxu0 %v121
    %679 = vmatprep.subr.mxu0 %v126
    %680 = vmatpush1.msra.mxu0 %v125
    %681 = vmatprep.subr.mxu0 %v130
    %682 = vmatpush1.msra.mxu0 %v129
    %683 = vmatprep.subr.mxu0 0.0
    %684 = vmatpush1.msra.mxu0 0.0
    %685 = vmatprep.subr.mxu0 0.0
    %686 = vmatpush1.msra.mxu0 0.0
    %687 = vmatprep.subr.mxu0 0.0
    %688 = vmatpush1.msra.mxu0 0.0
    %689 = vmatprep.subr.mxu0 0.0
    %690 = vmatpush1.msra.mxu0 0.0
    %691 = vmatprep.subr.mxu0 0.0
    %692 = vmatpush1.msra.mxu0 0.0
    %693 = vmatprep.subr.mxu0 0.0
    %694 = vmatpush1.msra.mxu0 0.0
    %695 = vmatprep.subr.mxu0 0.0
    %696 = vmatpush1.msra.mxu0 0.0
    %697 = vmatprep.subr.mxu0 0.0
    %698 = vmatpush1.msra.mxu0 0.0
    %699 = vmatprep.subr.mxu0 0.0
    %700 = vmatpush1.msra.mxu0 0.0
    %701 = vmatprep.subr.mxu0 0.0
    %702 = vmatpush1.msra.mxu0 0.0
    %703 = vmatprep.subr.mxu0 0.0
    %704 = vmatpush1.msra.mxu0 0.0
    %705 = vmatprep.subr.mxu0 0.0
    %706 = vmatpush1.msra.mxu0 0.0
    %707 = vmatprep.subr.mxu0 0.0
    %708 = vmatpush1.msra.mxu0 0.0
    %709 = vmatprep.subr.mxu0 0.0
    %710 = vmatpush1.msra.mxu0 0.0
    %711 = vmatprep.subr.mxu0 0.0
    %712 = vmatpush1.msra.mxu0 0.0
    %713 = vmatprep.subr.mxu0 0.0
    %714 = vmatpush1.msra.mxu0 0.0
    %715 = vmatprep.mubr.f32.mxu0 0.0
    %716 = vmatmul.mubr.f32.gmra.mrb[0].mxu0 %v643
    %v717 = vpop.f32.mrb[0].mxu0
    %v718 = vadd.f32 0.0, %v717
    %v719 = vpop.f32.mrb[0].mxu0
    %v720 = vadd.f32 0.0, %v719
    %721 = vdwg.mxu0
    %722 = vmatprep.subr.mxu0 %v72
    %723 = vmatpush1.msra.mxu0 %v71
    %724 = vmatprep.subr.mxu0 %v76
    %725 = vmatpush1.msra.mxu0 %v75
    %726 = vmatprep.subr.mxu0 %v80
    %727 = vmatpush1.msra.mxu0 %v79
    %728 = vmatprep.subr.mxu0 %v84
    %729 = vmatpush1.msra.mxu0 %v83
    %730 = vmatprep.subr.mxu0 %v88
    %731 = vmatpush1.msra.mxu0 %v87
    %732 = vmatprep.subr.mxu0 %v92
    %733 = vmatpush1.msra.mxu0 %v91
    %734 = vmatprep.subr.mxu0 %v96
    %735 = vmatpush1.msra.mxu0 %v95
    %736 = vmatprep.subr.mxu0 %v100
    %737 = vmatpush1.msra.mxu0 %v99
    %738 = vmatprep.subr.mxu0 %v104
    %739 = vmatpush1.msra.mxu0 %v103
    %740 = vmatprep.subr.mxu0 %v108
    %741 = vmatpush1.msra.mxu0 %v107
    %742 = vmatprep.subr.mxu0 %v112
    %743 = vmatpush1.msra.mxu0 %v111
    %744 = vmatprep.subr.mxu0 %v116
    %745 = vmatpush1.msra.mxu0 %v115
    %746 = vmatprep.subr.mxu0 %v120
    %747 = vmatpush1.msra.mxu0 %v119
    %748 = vmatprep.subr.mxu0 %v124
    %749 = vmatpush1.msra.mxu0 %v123
    %750 = vmatprep.subr.mxu0 %v128
    %751 = vmatpush1.msra.mxu0 %v127
    %752 = vmatprep.subr.mxu0 %v132
    %753 = vmatpush1.msra.mxu0 %v131
    %754 = vmatprep.subr.mxu0 0.0
    %755 = vmatpush1.msra.mxu0 0.0
    %756 = vmatprep.subr.mxu0 0.0
    %757 = vmatpush1.msra.mxu0 0.0
    %758 = vmatprep.subr.mxu0 0.0
    %759 = vmatpush1.msra.mxu0 0.0
    %760 = vmatprep.subr.mxu0 0.0
    %761 = vmatpush1.msra.mxu0 0.0
    %762 = vmatprep.subr.mxu0 0.0
    %763 = vmatpush1.msra.mxu0 0.0
    %764 = vmatprep.subr.mxu0 0.0
    %765 = vmatpush1.msra.mxu0 0.0
    %766 = vmatprep.subr.mxu0 0.0
    %767 = vmatpush1.msra.mxu0 0.0
    %768 = vmatprep.subr.mxu0 0.0
    %769 = vmatpush1.msra.mxu0 0.0
    %770 = vmatprep.subr.mxu0 0.0
    %771 = vmatpush1.msra.mxu0 0.0
    %772 = vmatprep.subr.mxu0 0.0
    %773 = vmatpush1.msra.mxu0 0.0
    %774 = vmatprep.subr.mxu0 0.0
    %775 = vmatpush1.msra.mxu0 0.0
    %776 = vmatprep.subr.mxu0 0.0
    %777 = vmatpush1.msra.mxu0 0.0
    %778 = vmatprep.subr.mxu0 0.0
    %779 = vmatpush1.msra.mxu0 0.0
    %780 = vmatprep.subr.mxu0 0.0
    %781 = vmatpush1.msra.mxu0 0.0
    %782 = vmatprep.subr.mxu0 0.0
    %783 = vmatpush1.msra.mxu0 0.0
    %784 = vmatprep.subr.mxu0 0.0
    %785 = vmatpush1.msra.mxu0 0.0
    %786 = vmatprep.mubr.f32.mxu0 0.0
    %787 = vmatmul.mubr.f32.gmra.mrb[0].mxu0 %v643
    %v788 = vpop.f32.mrb[0].mxu0
    %v789 = vadd.f32 0.0, %v788
    %v790 = vpop.f32.mrb[0].mxu0
    %v791 = vadd.f32 0.0, %v790
    %792 = vdwg.mxu0
    %v793 = vadd.f32 %v647, %v718
    %v794 = vadd.f32 %v648, %v720
    %v795 = vadd.f32 %v649, %v789
    %v796 = vadd.f32 %v650, %v791
    %v797 = vmul.f32 %v793, 0.5
    %v798 = vtanh.pop %v797
    %v799 = vadd.f32 %v798, 1.0
    %v800 = vmul.f32 %v799, 0.5
    %v801 = vmul.f32 %v794, 0.5
    %v802 = vtanh.pop %v801
    %v803 = vadd.f32 %v802, 1.0
    %v804 = vmul.f32 %v803, 0.5
    %v805 = vtanh.pop %v795
    %v806 = vmul.f32 %v796, 0.5
    %v807 = vtanh.pop %v806
    %v808 = vadd.f32 %v807, 1.0
    %v809 = vmul.f32 %v808, 0.5
    %v810 = vmul.f32 %v804, %v641
    %v811 = vmul.f32 %v800, %v805
    %v812 = vadd.f32 %v810, %v811
    %v813 = vtanh.pop %v812
    %v814 = vmul.f32 %v809, %v813
    %s815 = scalar_lea.vmem [#allocation10], 24
    %816 = vst [vmem:[%s815] sm:$0xff] %v814
    %s817 = scalar_lea.vmem [#allocation4], 128
    %v818 = vld [vmem:[%s817] sm:$0xff]
    %v819 = vld [vmem:[%s817 + $0x8] sm:$0xff]
    %v820 = vld [vmem:[%s817 + $0x10] sm:$0xff]
    %v821 = vld [vmem:[%s817 + $0x18] sm:$0xff]
    %822 = vmatprep.subr.mxu0 %v70
    %823 = vmatpush1.msra.mxu0 %v69
    %824 = vmatprep.subr.mxu0 %v74
    %825 = vmatpush1.msra.mxu0 %v73
    %826 = vmatprep.subr.mxu0 %v78
    %827 = vmatpush1.msra.mxu0 %v77
    %828 = vmatprep.subr.mxu0 %v82
    %829 = vmatpush1.msra.mxu0 %v81
    %830 = vmatprep.subr.mxu0 %v86
    %831 = vmatpush1.msra.mxu0 %v85
    %832 = vmatprep.subr.mxu0 %v90
    %833 = vmatpush1.msra.mxu0 %v89
    %834 = vmatprep.subr.mxu0 %v94
    %835 = vmatpush1.msra.mxu0 %v93
    %836 = vmatprep.subr.mxu0 %v98
    %837 = vmatpush1.msra.mxu0 %v97
    %838 = vmatprep.subr.mxu0 %v102
    %839 = vmatpush1.msra.mxu0 %v101
    %840 = vmatprep.subr.mxu0 %v106
    %841 = vmatpush1.msra.mxu0 %v105
    %842 = vmatprep.subr.mxu0 %v110
    %843 = vmatpush1.msra.mxu0 %v109
    %844 = vmatprep.subr.mxu0 %v114
    %845 = vmatpush1.msra.mxu0 %v113
    %846 = vmatprep.subr.mxu0 %v118
    %847 = vmatpush1.msra.mxu0 %v117
    %848 = vmatprep.subr.mxu0 %v122
    %849 = vmatpush1.msra.mxu0 %v121
    %850 = vmatprep.subr.mxu0 %v126
    %851 = vmatpush1.msra.mxu0 %v125
    %852 = vmatprep.subr.mxu0 %v130
    %853 = vmatpush1.msra.mxu0 %v129
    %854 = vmatprep.subr.mxu0 0.0
    %855 = vmatpush1.msra.mxu0 0.0
    %856 = vmatprep.subr.mxu0 0.0
    %857 = vmatpush1.msra.mxu0 0.0
    %858 = vmatprep.subr.mxu0 0.0
    %859 = vmatpush1.msra.mxu0 0.0
    %860 = vmatprep.subr.mxu0 0.0
    %861 = vmatpush1.msra.mxu0 0.0
    %862 = vmatprep.subr.mxu0 0.0
    %863 = vmatpush1.msra.mxu0 0.0
    %864 = vmatprep.subr.mxu0 0.0
    %865 = vmatpush1.msra.mxu0 0.0
    %866 = vmatprep.subr.mxu0 0.0
    %867 = vmatpush1.msra.mxu0 0.0
    %868 = vmatprep.subr.mxu0 0.0
    %869 = vmatpush1.msra.mxu0 0.0
    %870 = vmatprep.subr.mxu0 0.0
    %871 = vmatpush1.msra.mxu0 0.0
    %872 = vmatprep.subr.mxu0 0.0
    %873 = vmatpush1.msra.mxu0 0.0
    %874 = vmatprep.subr.mxu0 0.0
    %875 = vmatpush1.msra.mxu0 0.0
    %876 = vmatprep.subr.mxu0 0.0
    %877 = vmatpush1.msra.mxu0 0.0
    %878 = vmatprep.subr.mxu0 0.0
    %879 = vmatpush1.msra.mxu0 0.0
    %880 = vmatprep.subr.mxu0 0.0
    %881 = vmatpush1.msra.mxu0 0.0
    %882 = vmatprep.subr.mxu0 0.0
    %883 = vmatpush1.msra.mxu0 0.0
    %884 = vmatprep.subr.mxu0 0.0
    %885 = vmatpush1.msra.mxu0 0.0
    %886 = vmatprep.mubr.f32.mxu0 0.0
    %887 = vmatmul.mubr.f32.gmra.mrb[0].mxu0 %v814
    %v888 = vpop.f32.mrb[0].mxu0
    %v889 = vadd.f32 0.0, %v888
    %v890 = vpop.f32.mrb[0].mxu0
    %v891 = vadd.f32 0.0, %v890
    %892 = vdwg.mxu0
    %893 = vmatprep.subr.mxu0 %v72
    %894 = vmatpush1.msra.mxu0 %v71
    %895 = vmatprep.subr.mxu0 %v76
    %896 = vmatpush1.msra.mxu0 %v75
    %897 = vmatprep.subr.mxu0 %v80
    %898 = vmatpush1.msra.mxu0 %v79
    %899 = vmatprep.subr.mxu0 %v84
    %900 = vmatpush1.msra.mxu0 %v83
    %901 = vmatprep.subr.mxu0 %v88
    %902 = vmatpush1.msra.mxu0 %v87
    %903 = vmatprep.subr.mxu0 %v92
    %904 = vmatpush1.msra.mxu0 %v91
    %905 = vmatprep.subr.mxu0 %v96
    %906 = vmatpush1.msra.mxu0 %v95
    %907 = vmatprep.subr.mxu0 %v100
    %908 = vmatpush1.msra.mxu0 %v99
    %909 = vmatprep.subr.mxu0 %v104
    %910 = vmatpush1.msra.mxu0 %v103
    %911 = vmatprep.subr.mxu0 %v108
    %912 = vmatpush1.msra.mxu0 %v107
    %913 = vmatprep.subr.mxu0 %v112
    %914 = vmatpush1.msra.mxu0 %v111
    %915 = vmatprep.subr.mxu0 %v116
    %916 = vmatpush1.msra.mxu0 %v115
    %917 = vmatprep.subr.mxu0 %v120
    %918 = vmatpush1.msra.mxu0 %v119
    %919 = vmatprep.subr.mxu0 %v124
    %920 = vmatpush1.msra.mxu0 %v123
    %921 = vmatprep.subr.mxu0 %v128
    %922 = vmatpush1.msra.mxu0 %v127
    %923 = vmatprep.subr.mxu0 %v132
    %924 = vmatpush1.msra.mxu0 %v131
    %925 = vmatprep.subr.mxu0 0.0
    %926 = vmatpush1.msra.mxu0 0.0
    %927 = vmatprep.subr.mxu0 0.0
    %928 = vmatpush1.msra.mxu0 0.0
    %929 = vmatprep.subr.mxu0 0.0
    %930 = vmatpush1.msra.mxu0 0.0
    %931 = vmatprep.subr.mxu0 0.0
    %932 = vmatpush1.msra.mxu0 0.0
    %933 = vmatprep.subr.mxu0 0.0
    %934 = vmatpush1.msra.mxu0 0.0
    %935 = vmatprep.subr.mxu0 0.0
    %936 = vmatpush1.msra.mxu0 0.0
    %937 = vmatprep.subr.mxu0 0.0
    %938 = vmatpush1.msra.mxu0 0.0
    %939 = vmatprep.subr.mxu0 0.0
    %940 = vmatpush1.msra.mxu0 0.0
    %941 = vmatprep.subr.mxu0 0.0
    %942 = vmatpush1.msra.mxu0 0.0
    %943 = vmatprep.subr.mxu0 0.0
    %944 = vmatpush1.msra.mxu0 0.0
    %945 = vmatprep.subr.mxu0 0.0
    %946 = vmatpush1.msra.mxu0 0.0
    %947 = vmatprep.subr.mxu0 0.0
    %948 = vmatpush1.msra.mxu0 0.0
    %949 = vmatprep.subr.mxu0 0.0
    %950 = vmatpush1.msra.mxu0 0.0
    %951 = vmatprep.subr.mxu0 0.0
    %952 = vmatpush1.msra.mxu0 0.0
    %953 = vmatprep.subr.mxu0 0.0
    %954 = vmatpush1.msra.mxu0 0.0
    %955 = vmatprep.subr.mxu0 0.0
    %956 = vmatpush1.msra.mxu0 0.0
    %957 = vmatprep.mubr.f32.mxu0 0.0
    %958 = vmatmul.mubr.f32.gmra.mrb[0].mxu0 %v814
    %v959 = vpop.f32.mrb[0].mxu0
    %v960 = vadd.f32 0.0, %v959
    %v961 = vpop.f32.mrb[0].mxu0
    %v962 = vadd.f32 0.0, %v961
    %963 = vdwg.mxu0
    %v964 = vadd.f32 %v818, %v889
    %v965 = vadd.f32 %v819, %v891
    %v966 = vadd.f32 %v820, %v960
    %v967 = vadd.f32 %v821, %v962
    %v968 = vmul.f32 %v964, 0.5
    %v969 = vtanh.pop %v968
    %v970 = vadd.f32 %v969, 1.0
    %v971 = vmul.f32 %v970, 0.5
    %v972 = vmul.f32 %v965, 0.5
    %v973 = vtanh.pop %v972
    %v974 = vadd.f32 %v973, 1.0
    %v975 = vmul.f32 %v974, 0.5
    %v976 = vtanh.pop %v966
    %v977 = vmul.f32 %v967, 0.5
    %v978 = vtanh.pop %v977
    %v979 = vadd.f32 %v978, 1.0
    %v980 = vmul.f32 %v979, 0.5
    %v981 = vmul.f32 %v975, %v812
    %v982 = vmul.f32 %v971, %v976
    %v983 = vadd.f32 %v981, %v982
    %v984 = vtanh.pop %v983
    %v985 = vmul.f32 %v980, %v984
    %s986 = scalar_lea.vmem [#allocation10], 32
    %987 = vst [vmem:[%s986] sm:$0xff] %v985
    %s988 = scalar_lea.vmem [#allocation4], 160
    %v989 = vld [vmem:[%s988] sm:$0xff]
    %v990 = vld [vmem:[%s988 + $0x8] sm:$0xff]
    %v991 = vld [vmem:[%s988 + $0x10] sm:$0xff]
    %v992 = vld [vmem:[%s988 + $0x18] sm:$0xff]
    %993 = vmatprep.subr.mxu0 %v70
    %994 = vmatpush1.msra.mxu0 %v69
    %995 = vmatprep.subr.mxu0 %v74
    %996 = vmatpush1.msra.mxu0 %v73
    %997 = vmatprep.subr.mxu0 %v78
    %998 = vmatpush1.msra.mxu0 %v77
    %999 = vmatprep.subr.mxu0 %v82
    %1000 = vmatpush1.msra.mxu0 %v81
    %1001 = vmatprep.subr.mxu0 %v86
    %1002 = vmatpush1.msra.mxu0 %v85
    %1003 = vmatprep.subr.mxu0 %v90
    %1004 = vmatpush1.msra.mxu0 %v89
    %1005 = vmatprep.subr.mxu0 %v94
    %1006 = vmatpush1.msra.mxu0 %v93
    %1007 = vmatprep.subr.mxu0 %v98
    %1008 = vmatpush1.msra.mxu0 %v97
    %1009 = vmatprep.subr.mxu0 %v102
    %1010 = vmatpush1.msra.mxu0 %v101
    %1011 = vmatprep.subr.mxu0 %v106
    %1012 = vmatpush1.msra.mxu0 %v105
    %1013 = vmatprep.subr.mxu0 %v110
    %1014 = vmatpush1.msra.mxu0 %v109
    %1015 = vmatprep.subr.mxu0 %v114
    %1016 = vmatpush1.msra.mxu0 %v113
    %1017 = vmatprep.subr.mxu0 %v118
    %1018 = vmatpush1.msra.mxu0 %v117
    %1019 = vmatprep.subr.mxu0 %v122
    %1020 = vmatpush1.msra.mxu0 %v121
    %1021 = vmatprep.subr.mxu0 %v126
    %1022 = vmatpush1.msra.mxu0 %v125
    %1023 = vmatprep.subr.mxu0 %v130
    %1024 = vmatpush1.msra.mxu0 %v129
    %1025 = vmatprep.subr.mxu0 0.0
    %1026 = vmatpush1.msra.mxu0 0.0
    %1027 = vmatprep.subr.mxu0 0.0
    %1028 = vmatpush1.msra.mxu0 0.0
    %1029 = vmatprep.subr.mxu0 0.0
    %1030 = vmatpush1.msra.mxu0 0.0
    %1031 = vmatprep.subr.mxu0 0.0
    %1032 = vmatpush1.msra.mxu0 0.0
    %1033 = vmatprep.subr.mxu0 0.0
    %1034 = vmatpush1.msra.mxu0 0.0
    %1035 = vmatprep.subr.mxu0 0.0
    %1036 = vmatpush1.msra.mxu0 0.0
    %1037 = vmatprep.subr.mxu0 0.0
    %1038 = vmatpush1.msra.mxu0 0.0
    %1039 = vmatprep.subr.mxu0 0.0
    %1040 = vmatpush1.msra.mxu0 0.0
    %1041 = vmatprep.subr.mxu0 0.0
    %1042 = vmatpush1.msra.mxu0 0.0
    %1043 = vmatprep.subr.mxu0 0.0
    %1044 = vmatpush1.msra.mxu0 0.0
    %1045 = vmatprep.subr.mxu0 0.0
    %1046 = vmatpush1.msra.mxu0 0.0
    %1047 = vmatprep.subr.mxu0 0.0
    %1048 = vmatpush1.msra.mxu0 0.0
    %1049 = vmatprep.subr.mxu0 0.0
    %1050 = vmatpush1.msra.mxu0 0.0
    %1051 = vmatprep.subr.mxu0 0.0
    %1052 = vmatpush1.msra.mxu0 0.0
    %1053 = vmatprep.subr.mxu0 0.0
    %1054 = vmatpush1.msra.mxu0 0.0
    %1055 = vmatprep.subr.mxu0 0.0
    %1056 = vmatpush1.msra.mxu0 0.0
    %1057 = vmatprep.mubr.f32.mxu0 0.0
    %1058 = vmatmul.mubr.f32.gmra.mrb[0].mxu0 %v985
    %v1059 = vpop.f32.mrb[0].mxu0
    %v1060 = vadd.f32 0.0, %v1059
    %v1061 = vpop.f32.mrb[0].mxu0
    %v1062 = vadd.f32 0.0, %v1061
    %1063 = vdwg.mxu0
    %1064 = vmatprep.subr.mxu0 %v72
    %1065 = vmatpush1.msra.mxu0 %v71
    %1066 = vmatprep.subr.mxu0 %v76
    %1067 = vmatpush1.msra.mxu0 %v75
    %1068 = vmatprep.subr.mxu0 %v80
    %1069 = vmatpush1.msra.mxu0 %v79
    %1070 = vmatprep.subr.mxu0 %v84
    %1071 = vmatpush1.msra.mxu0 %v83
    %1072 = vmatprep.subr.mxu0 %v88
    %1073 = vmatpush1.msra.mxu0 %v87
    %1074 = vmatprep.subr.mxu0 %v92
    %1075 = vmatpush1.msra.mxu0 %v91
    %1076 = vmatprep.subr.mxu0 %v96
    %1077 = vmatpush1.msra.mxu0 %v95
    %1078 = vmatprep.subr.mxu0 %v100
    %1079 = vmatpush1.msra.mxu0 %v99
    %1080 = vmatprep.subr.mxu0 %v104
    %1081 = vmatpush1.msra.mxu0 %v103
    %1082 = vmatprep.subr.mxu0 %v108
    %1083 = vmatpush1.msra.mxu0 %v107
    %1084 = vmatprep.subr.mxu0 %v112
    %1085 = vmatpush1.msra.mxu0 %v111
    %1086 = vmatprep.subr.mxu0 %v116
    %1087 = vmatpush1.msra.mxu0 %v115
    %1088 = vmatprep.subr.mxu0 %v120
    %1089 = vmatpush1.msra.mxu0 %v119
    %1090 = vmatprep.subr.mxu0 %v124
    %1091 = vmatpush1.msra.mxu0 %v123
    %1092 = vmatprep.subr.mxu0 %v128
    %1093 = vmatpush1.msra.mxu0 %v127
    %1094 = vmatprep.subr.mxu0 %v132
    %1095 = vmatpush1.msra.mxu0 %v131
    %1096 = vmatprep.subr.mxu0 0.0
    %1097 = vmatpush1.msra.mxu0 0.0
    %1098 = vmatprep.subr.mxu0 0.0
    %1099 = vmatpush1.msra.mxu0 0.0
    %1100 = vmatprep.subr.mxu0 0.0
    %1101 = vmatpush1.msra.mxu0 0.0
    %1102 = vmatprep.subr.mxu0 0.0
    %1103 = vmatpush1.msra.mxu0 0.0
    %1104 = vmatprep.subr.mxu0 0.0
    %1105 = vmatpush1.msra.mxu0 0.0
    %1106 = vmatprep.subr.mxu0 0.0
    %1107 = vmatpush1.msra.mxu0 0.0
    %1108 = vmatprep.subr.mxu0 0.0
    %1109 = vmatpush1.msra.mxu0 0.0
    %1110 = vmatprep.subr.mxu0 0.0
    %1111 = vmatpush1.msra.mxu0 0.0
    %1112 = vmatprep.subr.mxu0 0.0
    %1113 = vmatpush1.msra.mxu0 0.0
    %1114 = vmatprep.subr.mxu0 0.0
    %1115 = vmatpush1.msra.mxu0 0.0
    %1116 = vmatprep.subr.mxu0 0.0
    %1117 = vmatpush1.msra.mxu0 0.0
    %1118 = vmatprep.subr.mxu0 0.0
    %1119 = vmatpush1.msra.mxu0 0.0
    %1120 = vmatprep.subr.mxu0 0.0
    %1121 = vmatpush1.msra.mxu0 0.0
    %1122 = vmatprep.subr.mxu0 0.0
    %1123 = vmatpush1.msra.mxu0 0.0
    %1124 = vmatprep.subr.mxu0 0.0
    %1125 = vmatpush1.msra.mxu0 0.0
    %1126 = vmatprep.subr.mxu0 0.0
    %1127 = vmatpush1.msra.mxu0 0.0
    %1128 = vmatprep.mubr.f32.mxu0 0.0
    %1129 = vmatmul.mubr.f32.gmra.mrb[0].mxu0 %v985
    %v1130 = vpop.f32.mrb[0].mxu0
    %v1131 = vadd.f32 0.0, %v1130
    %v1132 = vpop.f32.mrb[0].mxu0
    %v1133 = vadd.f32 0.0, %v1132
    %1134 = vdwg.mxu0
    %v1135 = vadd.f32 %v989, %v1060
    %v1136 = vadd.f32 %v990, %v1062
    %v1137 = vadd.f32 %v991, %v1131
    %v1138 = vadd.f32 %v992, %v1133
    %v1139 = vmul.f32 %v1135, 0.5
    %v1140 = vtanh.pop %v1139
    %v1141 = vadd.f32 %v1140, 1.0
    %v1142 = vmul.f32 %v1141, 0.5
    %v1143 = vmul.f32 %v1136, 0.5
    %v1144 = vtanh.pop %v1143
    %v1145 = vadd.f32 %v1144, 1.0
    %v1146 = vmul.f32 %v1145, 0.5
    %v1147 = vtanh.pop %v1137
    %v1148 = vmul.f32 %v1138, 0.5
    %v1149 = vtanh.pop %v1148
    %v1150 = vadd.f32 %v1149, 1.0
    %v1151 = vmul.f32 %v1150, 0.5
    %v1152 = vmul.f32 %v1146, %v983
    %v1153 = vmul.f32 %v1142, %v1147
    %v1154 = vadd.f32 %v1152, %v1153
    %v1155 = vtanh.pop %v1154
    %v1156 = vmul.f32 %v1151, %v1155
    %s1157 = scalar_lea.vmem [#allocation10], 40
    %1158 = vst [vmem:[%s1157] sm:$0xff] %v1156
    %s1159 = scalar_lea.vmem [#allocation4], 192
    %v1160 = vld [vmem:[%s1159] sm:$0xff]
    %v1161 = vld [vmem:[%s1159 + $0x8] sm:$0xff]
    %v1162 = vld [vmem:[%s1159 + $0x10] sm:$0xff]
    %v1163 = vld [vmem:[%s1159 + $0x18] sm:$0xff]
    %1164 = vmatprep.subr.mxu0 %v70
    %1165 = vmatpush1.msra.mxu0 %v69
    %1166 = vmatprep.subr.mxu0 %v74
    %1167 = vmatpush1.msra.mxu0 %v73
    %1168 = vmatprep.subr.mxu0 %v78
    %1169 = vmatpush1.msra.mxu0 %v77
    %1170 = vmatprep.subr.mxu0 %v82
    %1171 = vmatpush1.msra.mxu0 %v81
    %1172 = vmatprep.subr.mxu0 %v86
    %1173 = vmatpush1.msra.mxu0 %v85
    %1174 = vmatprep.subr.mxu0 %v90
    %1175 = vmatpush1.msra.mxu0 %v89
    %1176 = vmatprep.subr.mxu0 %v94
    %1177 = vmatpush1.msra.mxu0 %v93
    %1178 = vmatprep.subr.mxu0 %v98
    %1179 = vmatpush1.msra.mxu0 %v97
    %1180 = vmatprep.subr.mxu0 %v102
    %1181 = vmatpush1.msra.mxu0 %v101
    %1182 = vmatprep.subr.mxu0 %v106
    %1183 = vmatpush1.msra.mxu0 %v105
    %1184 = vmatprep.subr.mxu0 %v110
    %1185 = vmatpush1.msra.mxu0 %v109
    %1186 = vmatprep.subr.mxu0 %v114
    %1187 = vmatpush1.msra.mxu0 %v113
    %1188 = vmatprep.subr.mxu0 %v118
    %1189 = vmatpush1.msra.mxu0 %v117
    %1190 = vmatprep.subr.mxu0 %v122
    %1191 = vmatpush1.msra.mxu0 %v121
    %1192 = vmatprep.subr.mxu0 %v126
    %1193 = vmatpush1.msra.mxu0 %v125
    %1194 = vmatprep.subr.mxu0 %v130
    %1195 = vmatpush1.msra.mxu0 %v129
    %1196 = vmatprep.subr.mxu0 0.0
    %1197 = vmatpush1.msra.mxu0 0.0
    %1198 = vmatprep.subr.mxu0 0.0
    %1199 = vmatpush1.msra.mxu0 0.0
    %1200 = vmatprep.subr.mxu0 0.0
    %1201 = vmatpush1.msra.mxu0 0.0
    %1202 = vmatprep.subr.mxu0 0.0
    %1203 = vmatpush1.msra.mxu0 0.0
    %1204 = vmatprep.subr.mxu0 0.0
    %1205 = vmatpush1.msra.mxu0 0.0
    %1206 = vmatprep.subr.mxu0 0.0
    %1207 = vmatpush1.msra.mxu0 0.0
    %1208 = vmatprep.subr.mxu0 0.0
    %1209 = vmatpush1.msra.mxu0 0.0
    %1210 = vmatprep.subr.mxu0 0.0
    %1211 = vmatpush1.msra.mxu0 0.0
    %1212 = vmatprep.subr.mxu0 0.0
    %1213 = vmatpush1.msra.mxu0 0.0
    %1214 = vmatprep.subr.mxu0 0.0
    %1215 = vmatpush1.msra.mxu0 0.0
    %1216 = vmatprep.subr.mxu0 0.0
    %1217 = vmatpush1.msra.mxu0 0.0
    %1218 = vmatprep.subr.mxu0 0.0
    %1219 = vmatpush1.msra.mxu0 0.0
    %1220 = vmatprep.subr.mxu0 0.0
    %1221 = vmatpush1.msra.mxu0 0.0
    %1222 = vmatprep.subr.mxu0 0.0
    %1223 = vmatpush1.msra.mxu0 0.0
    %1224 = vmatprep.subr.mxu0 0.0
    %1225 = vmatpush1.msra.mxu0 0.0
    %1226 = vmatprep.subr.mxu0 0.0
    %1227 = vmatpush1.msra.mxu0 0.0
    %1228 = vmatprep.mubr.f32.mxu0 0.0
    %1229 = vmatmul.mubr.f32.gmra.mrb[0].mxu0 %v1156
    %v1230 = vpop.f32.mrb[0].mxu0
    %v1231 = vadd.f32 0.0, %v1230
    %v1232 = vpop.f32.mrb[0].mxu0
    %v1233 = vadd.f32 0.0, %v1232
    %1234 = vdwg.mxu0
    %1235 = vmatprep.subr.mxu0 %v72
    %1236 = vmatpush1.msra.mxu0 %v71
    %1237 = vmatprep.subr.mxu0 %v76
    %1238 = vmatpush1.msra.mxu0 %v75
    %1239 = vmatprep.subr.mxu0 %v80
    %1240 = vmatpush1.msra.mxu0 %v79
    %1241 = vmatprep.subr.mxu0 %v84
    %1242 = vmatpush1.msra.mxu0 %v83
    %1243 = vmatprep.subr.mxu0 %v88
    %1244 = vmatpush1.msra.mxu0 %v87
    %1245 = vmatprep.subr.mxu0 %v92
    %1246 = vmatpush1.msra.mxu0 %v91
    %1247 = vmatprep.subr.mxu0 %v96
    %1248 = vmatpush1.msra.mxu0 %v95
    %1249 = vmatprep.subr.mxu0 %v100
    %1250 = vmatpush1.msra.mxu0 %v99
    %1251 = vmatprep.subr.mxu0 %v104
    %1252 = vmatpush1.msra.mxu0 %v103
    %1253 = vmatprep.subr.mxu0 %v108
    %1254 = vmatpush1.msra.mxu0 %v107
    %1255 = vmatprep.subr.mxu0 %v112
    %1256 = vmatpush1.msra.mxu0 %v111
    %1257 = vmatprep.subr.mxu0 %v116
    %1258 = vmatpush1.msra.mxu0 %v115
    %1259 = vmatprep.subr.mxu0 %v120
    %1260 = vmatpush1.msra.mxu0 %v119
    %1261 = vmatprep.subr.mxu0 %v124
    %1262 = vmatpush1.msra.mxu0 %v123
    %1263 = vmatprep.subr.mxu0 %v128
    %1264 = vmatpush1.msra.mxu0 %v127
    %1265 = vmatprep.subr.mxu0 %v132
    %1266 = vmatpush1.msra.mxu0 %v131
    %1267 = vmatprep.subr.mxu0 0.0
    %1268 = vmatpush1.msra.mxu0 0.0
    %1269 = vmatprep.subr.mxu0 0.0
    %1270 = vmatpush1.msra.mxu0 0.0
    %1271 = vmatprep.subr.mxu0 0.0
    %1272 = vmatpush1.msra.mxu0 0.0
    %1273 = vmatprep.subr.mxu0 0.0
    %1274 = vmatpush1.msra.mxu0 0.0
    %1275 = vmatprep.subr.mxu0 0.0
    %1276 = vmatpush1.msra.mxu0 0.0
    %1277 = vmatprep.subr.mxu0 0.0
    %1278 = vmatpush1.msra.mxu0 0.0
    %1279 = vmatprep.subr.mxu0 0.0
    %1280 = vmatpush1.msra.mxu0 0.0
    %1281 = vmatprep.subr.mxu0 0.0
    %1282 = vmatpush1.msra.mxu0 0.0
    %1283 = vmatprep.subr.mxu0 0.0
    %1284 = vmatpush1.msra.mxu0 0.0
    %1285 = vmatprep.subr.mxu0 0.0
    %1286 = vmatpush1.msra.mxu0 0.0
    %1287 = vmatprep.subr.mxu0 0.0
    %1288 = vmatpush1.msra.mxu0 0.0
    %1289 = vmatprep.subr.mxu0 0.0
    %1290 = vmatpush1.msra.mxu0 0.0
    %1291 = vmatprep.subr.mxu0 0.0
    %1292 = vmatpush1.msra.mxu0 0.0
    %1293 = vmatprep.subr.mxu0 0.0
    %1294 = vmatpush1.msra.mxu0 0.0
    %1295 = vmatprep.subr.mxu0 0.0
    %1296 = vmatpush1.msra.mxu0 0.0
    %1297 = vmatprep.subr.mxu0 0.0
    %1298 = vmatpush1.msra.mxu0 0.0
    %1299 = vmatprep.mubr.f32.mxu0 0.0
    %1300 = vmatmul.mubr.f32.gmra.mrb[0].mxu0 %v1156
    %v1301 = vpop.f32.mrb[0].mxu0
    %v1302 = vadd.f32 0.0, %v1301
    %v1303 = vpop.f32.mrb[0].mxu0
    %v1304 = vadd.f32 0.0, %v1303
    %1305 = vdwg.mxu0
    %v1306 = vadd.f32 %v1160, %v1231
    %v1307 = vadd.f32 %v1161, %v1233
    %v1308 = vadd.f32 %v1162, %v1302
    %v1309 = vadd.f32 %v1163, %v1304
    %v1310 = vmul.f32 %v1306, 0.5
    %v1311 = vtanh.pop %v1310
    %v1312 = vadd.f32 %v1311, 1.0
    %v1313 = vmul.f32 %v1312, 0.5
    %v1314 = vmul.f32 %v1307, 0.5
    %v1315 = vtanh.pop %v1314
    %v1316 = vadd.f32 %v1315, 1.0
    %v1317 = vmul.f32 %v1316, 0.5
    %v1318 = vtanh.pop %v1308
    %v1319 = vmul.f32 %v1309, 0.5
    %v1320 = vtanh.pop %v1319
    %v1321 = vadd.f32 %v1320, 1.0
    %v1322 = vmul.f32 %v1321, 0.5
    %v1323 = vmul.f32 %v1317, %v1154
    %v1324 = vmul.f32 %v1313, %v1318
    %v1325 = vadd.f32 %v1323, %v1324
    %v1326 = vtanh.pop %v1325
    %v1327 = vmul.f32 %v1322, %v1326
    %s1328 = scalar_lea.vmem [#allocation10], 48
    %1329 = vst [vmem:[%s1328] sm:$0xff] %v1327
    %s1330 = scalar_lea.vmem [#allocation4], 224
    %v1331 = vld [vmem:[%s1330] sm:$0xff]
    %v1332 = vld [vmem:[%s1330 + $0x8] sm:$0xff]
    %v1333 = vld [vmem:[%s1330 + $0x10] sm:$0xff]
    %v1334 = vld [vmem:[%s1330 + $0x18] sm:$0xff]
    %1335 = vmatprep.subr.mxu0 %v70
    %1336 = vmatpush1.msra.mxu0 %v69
    %1337 = vmatprep.subr.mxu0 %v74
    %1338 = vmatpush1.msra.mxu0 %v73
    %1339 = vmatprep.subr.mxu0 %v78
    %1340 = vmatpush1.msra.mxu0 %v77
    %1341 = vmatprep.subr.mxu0 %v82
    %1342 = vmatpush1.msra.mxu0 %v81
    %1343 = vmatprep.subr.mxu0 %v86
    %1344 = vmatpush1.msra.mxu0 %v85
    %1345 = vmatprep.subr.mxu0 %v90
    %1346 = vmatpush1.msra.mxu0 %v89
    %1347 = vmatprep.subr.mxu0 %v94
    %1348 = vmatpush1.msra.mxu0 %v93
    %1349 = vmatprep.subr.mxu0 %v98
    %1350 = vmatpush1.msra.mxu0 %v97
    %1351 = vmatprep.subr.mxu0 %v102
    %1352 = vmatpush1.msra.mxu0 %v101
    %1353 = vmatprep.subr.mxu0 %v106
    %1354 = vmatpush1.msra.mxu0 %v105
    %1355 = vmatprep.subr.mxu0 %v110
    %1356 = vmatpush1.msra.mxu0 %v109
    %1357 = vmatprep.subr.mxu0 %v114
    %1358 = vmatpush1.msra.mxu0 %v113
    %1359 = vmatprep.subr.mxu0 %v118
    %1360 = vmatpush1.msra.mxu0 %v117
    %1361 = vmatprep.subr.mxu0 %v122
    %1362 = vmatpush1.msra.mxu0 %v121
    %1363 = vmatprep.subr.mxu0 %v126
    %1364 = vmatpush1.msra.mxu0 %v125
    %1365 = vmatprep.subr.mxu0 %v130
    %1366 = vmatpush1.msra.mxu0 %v129
    %1367 = vmatprep.subr.mxu0 0.0
    %1368 = vmatpush1.msra.mxu0 0.0
    %1369 = vmatprep.subr.mxu0 0.0
    %1370 = vmatpush1.msra.mxu0 0.0
    %1371 = vmatprep.subr.mxu0 0.0
    %1372 = vmatpush1.msra.mxu0 0.0
    %1373 = vmatprep.subr.mxu0 0.0
    %1374 = vmatpush1.msra.mxu0 0.0
    %1375 = vmatprep.subr.mxu0 0.0
    %1376 = vmatpush1.msra.mxu0 0.0
    %1377 = vmatprep.subr.mxu0 0.0
    %1378 = vmatpush1.msra.mxu0 0.0
    %1379 = vmatprep.subr.mxu0 0.0
    %1380 = vmatpush1.msra.mxu0 0.0
    %1381 = vmatprep.subr.mxu0 0.0
    %1382 = vmatpush1.msra.mxu0 0.0
    %1383 = vmatprep.subr.mxu0 0.0
    %1384 = vmatpush1.msra.mxu0 0.0
    %1385 = vmatprep.subr.mxu0 0.0
    %1386 = vmatpush1.msra.mxu0 0.0
    %1387 = vmatprep.subr.mxu0 0.0
    %1388 = vmatpush1.msra.mxu0 0.0
    %1389 = vmatprep.subr.mxu0 0.0
    %1390 = vmatpush1.msra.mxu0 0.0
    %1391 = vmatprep.subr.mxu0 0.0
    %1392 = vmatpush1.msra.mxu0 0.0
    %1393 = vmatprep.subr.mxu0 0.0
    %1394 = vmatpush1.msra.mxu0 0.0
    %1395 = vmatprep.subr.mxu0 0.0
    %1396 = vmatpush1.msra.mxu0 0.0
    %1397 = vmatprep.subr.mxu0 0.0
    %1398 = vmatpush1.msra.mxu0 0.0
    %1399 = vmatprep.mubr.f32.mxu0 0.0
    %1400 = vmatmul.mubr.f32.gmra.mrb[0].mxu0 %v1327
    %v1401 = vpop.f32.mrb[0].mxu0
    %v1402 = vadd.f32 0.0, %v1401
    %v1403 = vpop.f32.mrb[0].mxu0
    %v1404 = vadd.f32 0.0, %v1403
    %1405 = vdwg.mxu0
    %1406 = vmatprep.subr.mxu0 %v72
    %1407 = vmatpush1.msra.mxu0 %v71
    %1408 = vmatprep.subr.mxu0 %v76
    %1409 = vmatpush1.msra.mxu0 %v75
    %1410 = vmatprep.subr.mxu0 %v80
    %1411 = vmatpush1.msra.mxu0 %v79
    %1412 = vmatprep.subr.mxu0 %v84
    %1413 = vmatpush1.msra.mxu0 %v83
    %1414 = vmatprep.subr.mxu0 %v88
    %1415 = vmatpush1.msra.mxu0 %v87
    %1416 = vmatprep.subr.mxu0 %v92
    %1417 = vmatpush1.msra.mxu0 %v91
    %1418 = vmatprep.subr.mxu0 %v96
    %1419 = vmatpush1.msra.mxu0 %v95
    %1420 = vmatprep.subr.mxu0 %v100
    %1421 = vmatpush1.msra.mxu0 %v99
    %1422 = vmatprep.subr.mxu0 %v104
    %1423 = vmatpush1.msra.mxu0 %v103
    %1424 = vmatprep.subr.mxu0 %v108
    %1425 = vmatpush1.msra.mxu0 %v107
    %1426 = vmatprep.subr.mxu0 %v112
    %1427 = vmatpush1.msra.mxu0 %v111
    %1428 = vmatprep.subr.mxu0 %v116
    %1429 = vmatpush1.msra.mxu0 %v115
    %1430 = vmatprep.subr.mxu0 %v120
    %1431 = vmatpush1.msra.mxu0 %v119
    %1432 = vmatprep.subr.mxu0 %v124
    %1433 = vmatpush1.msra.mxu0 %v123
    %1434 = vmatprep.subr.mxu0 %v128
    %1435 = vmatpush1.msra.mxu0 %v127
    %1436 = vmatprep.subr.mxu0 %v132
    %1437 = vmatpush1.msra.mxu0 %v131
    %1438 = vmatprep.subr.mxu0 0.0
    %1439 = vmatpush1.msra.mxu0 0.0
    %1440 = vmatprep.subr.mxu0 0.0
    %1441 = vmatpush1.msra.mxu0 0.0
    %1442 = vmatprep.subr.mxu0 0.0
    %1443 = vmatpush1.msra.mxu0 0.0
    %1444 = vmatprep.subr.mxu0 0.0
    %1445 = vmatpush1.msra.mxu0 0.0
    %1446 = vmatprep.subr.mxu0 0.0
    %1447 = vmatpush1.msra.mxu0 0.0
    %1448 = vmatprep.subr.mxu0 0.0
    %1449 = vmatpush1.msra.mxu0 0.0
    %1450 = vmatprep.subr.mxu0 0.0
    %1451 = vmatpush1.msra.mxu0 0.0
    %1452 = vmatprep.subr.mxu0 0.0
    %1453 = vmatpush1.msra.mxu0 0.0
    %1454 = vmatprep.subr.mxu0 0.0
    %1455 = vmatpush1.msra.mxu0 0.0
    %1456 = vmatprep.subr.mxu0 0.0
    %1457 = vmatpush1.msra.mxu0 0.0
    %1458 = vmatprep.subr.mxu0 0.0
    %1459 = vmatpush1.msra.mxu0 0.0
    %1460 = vmatprep.subr.mxu0 0.0
    %1461 = vmatpush1.msra.mxu0 0.0
    %1462 = vmatprep.subr.mxu0 0.0
    %1463 = vmatpush1.msra.mxu0 0.0
    %1464 = vmatprep.subr.mxu0 0.0
    %1465 = vmatpush1.msra.mxu0 0.0
    %1466 = vmatprep.subr.mxu0 0.0
    %1467 = vmatpush1.msra.mxu0 0.0
    %1468 = vmatprep.subr.mxu0 0.0
    %1469 = vmatpush1.msra.mxu0 0.0
    %1470 = vmatprep.mubr.f32.mxu0 0.0
    %1471 = vmatmul.mubr.f32.gmra.mrb[0].mxu0 %v1327
    %v1472 = vpop.f32.mrb[0].mxu0
    %v1473 = vadd.f32 0.0, %v1472
    %v1474 = vpop.f32.mrb[0].mxu0
    %v1475 = vadd.f32 0.0, %v1474
    %1476 = vdwg.mxu0
    %v1477 = vadd.f32 %v1331, %v1402
    %v1478 = vadd.f32 %v1332, %v1404
    %v1479 = vadd.f32 %v1333, %v1473
    %v1480 = vadd.f32 %v1334, %v1475
    %v1481 = vmul.f32 %v1477, 0.5
    %v1482 = vtanh.pop %v1481
    %v1483 = vadd.f32 %v1482, 1.0
    %v1484 = vmul.f32 %v1483, 0.5
    %v1485 = vmul.f32 %v1478, 0.5
    %v1486 = vtanh.pop %v1485
    %v1487 = vadd.f32 %v1486, 1.0
    %v1488 = vmul.f32 %v1487, 0.5
    %v1489 = vtanh.pop %v1479
    %v1490 = vmul.f32 %v1480, 0.5
    %v1491 = vtanh.pop %v1490
    %v1492 = vadd.f32 %v1491, 1.0
    %v1493 = vmul.f32 %v1492, 0.5
    %v1494 = vmul.f32 %v1488, %v1325
    %v1495 = vmul.f32 %v1484, %v1489
    %v1496 = vadd.f32 %v1494, %v1495
    %v1497 = vtanh.pop %v1496
    %v1498 = vmul.f32 %v1493, %v1497
    %s1499 = scalar_lea.vmem [#allocation10], 56
    %1500 = vst [vmem:[%s1499] sm:$0xff] %v1498
    %1501 = vst [vmem:[#allocation2] sm:$0xff] %v1498
    %1502 = vst [vmem:[#allocation3] sm:$0xff] %v1496
    // Predicated region
    $region34: #{tpu_custom_call.1} parent=1 // pred_check
      %p1503 = pneg %p61
    $region35: #{tpu_custom_call.1} parent=1 // pred_check_branch
      %1505 = sbr.rel (%p1503) target = $region37
    $region36: #{tpu_custom_call.1} parent=1 // pred_region
      %1506 = vst [vmem:[#allocation11] sm:$0xff] %v1498
      %1507 = vst [vmem:[#allocation13] sm:$0xff] %v1496
    $region37: #{tpu_custom_call.1} parent=1 // pred_fallthru
      _
    // Predicated region
    $region38: #{tpu_custom_call.1} parent=1 // pred_check
      _
    $region39: #{tpu_custom_call.1} parent=1 // pred_check_branch
      %1509 = sbr.rel (0) target = $region41
    $region40: #{tpu_custom_call.1} parent=1 // pred_region
      %s1511 = ssub.s32 1024, 1024
      %1512 = vsyncadd [#allocation6], %s1511
      %s1513 = sshll.u32 [#allocation10], 4
      %s1514 = int_to_ptr.vmem [resolvable:$true] %s1513
      %1519 = dma.vmem_to_hbm [thread:$0]  %s1514, 1024, %s4, [#allocation6], 128, 128, 8
    $region41: #{tpu_custom_call.1} parent=1 // pred_fallthru
      _
    // Predicated region
    $region42: #{tpu_custom_call.1} parent=1 // pred_check
      _
    $region43: #{tpu_custom_call.1} parent=1 // pred_check_branch
      %1521 = sbr.rel (0) target = $region45
    $region44: #{tpu_custom_call.1} parent=1 // pred_region
      %s1523 = ssub.s32 128, 128
      %1524 = vsyncadd [#allocation12], %s1523
      %s1526 = sshll.u32 [#allocation11], 4
      %s1527 = int_to_ptr.vmem [resolvable:$true] %s1526
      %1529 = dma.vmem_to_hbm [thread:$0]  %s1527, 128, %s5, [#allocation12]
    $region45: #{tpu_custom_call.1} parent=1 // pred_fallthru
      _
    // Predicated region
    $region46: #{tpu_custom_call.1} parent=1 // pred_check
      _
    $region47: #{tpu_custom_call.1} parent=1 // pred_check_branch
      %1531 = sbr.rel (0) target = $region49
    $region48: #{tpu_custom_call.1} parent=1 // pred_region
      %s1533 = ssub.s32 128, 128
      %1534 = vsyncadd [#allocation12], %s1533
      %s1536 = sshll.u32 [#allocation13], 4
      %s1537 = int_to_ptr.vmem [resolvable:$true] %s1536
      %1539 = dma.vmem_to_hbm [thread:$0]  %s1537, 128, %s6, [#allocation12]
    $region49: #{tpu_custom_call.1} parent=1 // pred_fallthru
      _
    // Predicated region
    $region50: #{tpu_custom_call.1} parent=1 // pred_check
      _
    $region51: #{tpu_custom_call.1} parent=1 // pred_check_branch
      %1541 = sbr.rel (0) target = $region53
    $region52: #{tpu_custom_call.1} parent=1 // pred_region
      %1542 = dma.done [#allocation6], 1024
    $region53: #{tpu_custom_call.1} parent=1 // pred_fallthru
      _
    // Predicated region
    $region54: #{tpu_custom_call.1} parent=1 // pred_check
      _
    $region55: #{tpu_custom_call.1} parent=1 // pred_check_branch
      %1544 = sbr.rel (0) target = $region57
    $region56: #{tpu_custom_call.1} parent=1 // pred_region
      %1545 = dma.done [#allocation12], 128
    $region57: #{tpu_custom_call.1} parent=1 // pred_fallthru
      _
    // Predicated region
    $region58: #{tpu_custom_call.1} parent=1 // pred_check
      _
    $region59: #{tpu_custom_call.1} parent=1 // pred_check_branch
      %1547 = sbr.rel (0) target = $region61
    $region60: #{tpu_custom_call.1} parent=1 // pred_region
      %1548 = dma.done [#allocation12], 128
    $region61: #{tpu_custom_call.1} parent=1 // pred_fallthru
      _
    %1549 = vsyncpa [#allocation5], 1
    %1550 = vsyncpa [#allocation8], 1
    %1551 = vsyncpa [#allocation6], 1
    %1552 = vsyncpa [#allocation12], 1

</llo_original>
